<compile_context>
chip_gen: v7x
topology: tpu7x:2x2x1
jax: 0.10.0
libtpu: 0.0.40
codegen_flags: <defaults>
</compile_context>

<pallas_src>
import functools

import jax
import jax.numpy as jnp
from jax import lax
from jax.experimental import pallas as pl
from jax.experimental.pallas import tpu as pltpu


def _round_up(v, m):
    return (v + m - 1) // m * m


def dual_gru_kernel(ax_ref, as_ref, whrz_ref, bhrz_ref, whn_ref, bhn_ref,
                    out_ref, h_scr):
    """One grid step processes a (T_CHUNK, B_pad, ...) time slab sequentially."""

    @pl.when(pl.program_id(0) == 0)
    def _():
        h_scr[...] = jnp.zeros_like(h_scr)   # hidden=None -> zeros, like the module

    # Weights are resident in VMEM for the whole grid step.
    wh_rz = whrz_ref[...]          # (H_pad, 2*H_pad)  [hidden_r | hidden_z] fused
    bh_rz = bhrz_ref[...]          # (1, 2*H_pad)
    wh_n = whn_ref[...]            # (H_pad, H_pad)
    bh_n = bhn_ref[...]            # (1, H_pad)

    hp = whn_ref.shape[0]          # H_pad (multiple of 128 -> lane-aligned slices)
    t_chunk = out_ref.shape[0]

    # Fully unrolled static loop over the timesteps of this chunk.
    for tt in range(t_chunk):
        h = h_scr[...]             # (B_pad, H_pad), f32 carry
        ax = ax_ref[tt]            # (B_pad, 3*H_pad): [r | z | n], x @ Wi + bi (hoisted)
        a_s = as_ref[tt]           # (B_pad, 3*H_pad): [r | z | n], s @ Ws + bs (hoisted)

        # Fused hidden-side projection for the r and z gates (single MXU push).
        h_rz = jnp.dot(h, wh_rz, preferred_element_type=jnp.float32) + bh_rz
        hr = h_rz[:, :hp]
        hz = h_rz[:, hp:]

        r = 0.5 * (jax.nn.sigmoid(ax[:, :hp] + hr)
                   + jax.nn.sigmoid(a_s[:, :hp] + hr))
        z = 0.5 * (jax.nn.sigmoid(ax[:, hp:2 * hp] + hz)
                   + jax.nn.sigmoid(a_s[:, hp:2 * hp] + hz))

        hn = jnp.dot(r * h, wh_n, preferred_element_type=jnp.float32) + bh_n
        n = jnp.tanh(ax[:, 2 * hp:] + a_s[:, 2 * hp:] + hn)

        h_new = (1.0 - z) * n + z * h
        h_scr[...] = h_new
        out_ref[tt] = h_new.astype(out_ref.dtype)


@functools.partial(jax.jit, static_argnames=("hidden_size", "t_chunk"))
def dual_input_gru(x, s, params, hidden_size, t_chunk=8):
    """Batch-first forward. x, s: (B, T, I). Returns (output (B,T,H), hidden (1,B,H))."""
    # TODO(synk): optional non-None initial hidden state is not plumbed through
    # (module default hidden=None -> zeros is what the kernel implements).
    B, T, I = x.shape
    H = hidden_size
    Wi, bi, Ws, bs, Wh, bh = params   # Wi/Ws: (3, I, H); Wh: (3, H, H); b*: (3, 1, H)

    B_pad = _round_up(B, 8)           # sublane multiple
    H_pad = _round_up(H, 128)         # lane multiple -> unmasked stores / full EUP lanes
    G3 = 3 * H_pad
    T_pad = _round_up(T, t_chunk)
    n_chunks = T_pad // t_chunk

    f32 = jnp.float32

    # Pack the three gates along the output axis, each in its own 128-aligned slice.
    def pack_gate_cols(W, b):
        Wp = jnp.concatenate(
            [jnp.pad(W[g].astype(f32), ((0, 0), (0, H_pad - H))) for g in range(3)],
            axis=1)                                   # (in, 3*H_pad)
        bp = jnp.concatenate(
            [jnp.pad(b[g].astype(f32), ((0, 0), (0, H_pad - H))) for g in range(3)],
            axis=1)                                   # (1, 3*H_pad)
        return Wp, bp

    Wi_p, bi_p = pack_gate_cols(Wi, bi)
    Ws_p, bs_p = pack_gate_cols(Ws, bs)

    def pad_h(W):  # (H, H) -> (H_pad, H_pad)
        return jnp.pad(W.astype(f32), ((0, H_pad - H), (0, H_pad - H)))

    Wh_rz = jnp.concatenate([pad_h(Wh[0]), pad_h(Wh[1])], axis=1)        # (H_pad, 2*H_pad)
    bh_rz = jnp.concatenate(
        [jnp.pad(bh[0].astype(f32), ((0, 0), (0, H_pad - H))),
         jnp.pad(bh[1].astype(f32), ((0, 0), (0, H_pad - H)))], axis=1)  # (1, 2*H_pad)
    Wh_n = pad_h(Wh[2])                                                  # (H_pad, H_pad)
    bh_n = jnp.pad(bh[2].astype(f32), ((0, 0), (0, H_pad - H)))          # (1, H_pad)

    # Hoisted, time-independent input projections: one big matmul per branch,
    # biases folded, computed directly in time-major layout.
    x_tm = jnp.transpose(x, (1, 0, 2)).astype(f32).reshape(T * B, I)
    s_tm = jnp.transpose(s, (1, 0, 2)).astype(f32).reshape(T * B, I)
    ax = (x_tm @ Wi_p + bi_p).reshape(T, B, G3)
    a_s = (s_tm @ Ws_p + bs_p).reshape(T, B, G3)

    # Pad batch to a sublane multiple and time to a chunk multiple (padded tail
    # timesteps come after the real ones, so they never affect real outputs).
    ax = jnp.pad(ax, ((0, T_pad - T), (0, B_pad - B), (0, 0)))
    a_s = jnp.pad(a_s, ((0, T_pad - T), (0, B_pad - B), (0, 0)))

    const_spec = lambda shape: pl.BlockSpec(shape, lambda c, _s=shape: (0,) * len(_s))

    out_tm = pl.pallas_call(
        dual_gru_kernel,
        out_shape=jax.ShapeDtypeStruct((T_pad, B_pad, H_pad), f32),
        grid_spec=pltpu.PrefetchScalarGridSpec(
            num_scalar_prefetch=0,
            grid=(n_chunks,),
            in_specs=[
                pl.BlockSpec((t_chunk, B_pad, G3), lambda c: (c, 0, 0)),   # ax chunk
                pl.BlockSpec((t_chunk, B_pad, G3), lambda c: (c, 0, 0)),   # as chunk
                const_spec((H_pad, 2 * H_pad)),                            # Wh_rz
                const_spec((1, 2 * H_pad)),                                # bh_rz
                const_spec((H_pad, H_pad)),                                # Wh_n
                const_spec((1, H_pad)),                                    # bh_n
            ],
            out_specs=pl.BlockSpec((t_chunk, B_pad, H_pad), lambda c: (c, 0, 0)),
            scratch_shapes=[pltpu.VMEM((B_pad, H_pad), jnp.float32)],      # carried hidden
        ),
        compiler_params=pltpu.CompilerParams(
            dimension_semantics=("arbitrary",)),      # time recurrence is sequential
    )(ax, a_s, Wh_rz, bh_rz, Wh_n, bh_n)

    output = jnp.transpose(out_tm[:T, :B, :H], (1, 0, 2)).astype(x.dtype)  # (B, T, H)
    hidden = output[:, -1, :][None]                                        # (1, B, H)
    return output, hidden


def init_params(key, input_size, hidden_size):
    """Deterministic init mimicking torch.nn.Linear default (uniform +-1/sqrt(fan_in)),
    stored pre-transposed as (fan_in, H)."""
    H, I = hidden_size, input_size
    keys = jax.random.split(key, 6)

    def unif(k, shape, fan_in):
        bound = 1.0 / jnp.sqrt(float(fan_in))
        return jax.random.uniform(k, shape, jnp.float32, -bound, bound)

    Wi = unif(keys[0], (3, I, H), I)
    bi = unif(keys[1], (3, 1, H), I)
    Ws = unif(keys[2], (3, I, H), I)
    bs = unif(keys[3], (3, 1, H), I)
    Wh = unif(keys[4], (3, H, H), H)
    bh = unif(keys[5], (3, 1, H), H)
    return (Wi, bi, Ws, bs, Wh, bh)


def reference_forward(x, s, params, hidden_size):
    """Pure-JAX reference of DualInputGRU.forward (batch_first=True, hidden=None)."""
    Wi, bi, Ws, bs, Wh, bh = params
    B, T, I = x.shape

    def cell(h, xs):
        xt, st = xs
        hr = h @ Wh[0] + bh[0]
        hz = h @ Wh[1] + bh[1]
        r_in = jax.nn.sigmoid(xt @ Wi[0] + bi[0] + hr)
        r_sq = jax.nn.sigmoid(st @ Ws[0] + bs[0] + hr)
        r = (r_in + r_sq) / 2
        z_in = jax.nn.sigmoid(xt @ Wi[1] + bi[1] + hz)
        z_sq = jax.nn.sigmoid(st @ Ws[1] + bs[1] + hz)
        z = (z_in + z_sq) / 2
        n = jnp.tanh(xt @ Wi[2] + bi[2] + st @ Ws[2] + bs[2] + (r * h) @ Wh[2] + bh[2])
        h_new = (1 - z) * n + z * h
        return h_new, h_new

    h0 = jnp.zeros((B, hidden_size), jnp.float32)
    x_t = jnp.transpose(x, (1, 0, 2))
    s_t = jnp.transpose(s, (1, 0, 2))
    h_last, outs = lax.scan(cell, h0, (x_t, s_t))
    output = jnp.transpose(outs, (1, 0, 2))
    return output, h_last[None]


if __name__ == "__main__":
    B, T, I, H = 2, 16, 16, 32

    key = jax.random.PRNGKey(0)
    kx, ks, kp = jax.random.split(key, 3)
    x = jax.random.normal(kx, (B, T, I), jnp.float32)
    s = jax.random.normal(ks, (B, T, I), jnp.float32)
    params = init_params(kp, I, H)

    out, hid = dual_input_gru(x, s, params, H, t_chunk=8)
    out = jax.block_until_ready(out)
    hid = jax.block_until_ready(hid)

    # correctness check against pure-JAX reference
    out_ref, hid_ref = reference_forward(x, s, params, H)
    assert out.shape == (B, T, H) and hid.shape == (1, B, H)
    assert jnp.allclose(out, out_ref, atol=1e-5, rtol=1e-5), \
        float(jnp.max(jnp.abs(out - out_ref)))
    assert jnp.allclose(hid, hid_ref, atol=1e-5, rtol=1e-5)

    print("KERNEL_OK")
</pallas_src>

<mosaic_0001>
module attributes {stable_mosaic.version = 11 : i64} {
  func.func @dual_gru_kernel(%arg0: i32, %arg1: memref<8x8x384xf32, #tpu.memory_space<vmem>>, %arg2: memref<8x8x384xf32, #tpu.memory_space<vmem>>, %arg3: memref<128x256xf32, #tpu.memory_space<vmem>>, %arg4: memref<1x256xf32, #tpu.memory_space<vmem>>, %arg5: memref<128x128xf32, #tpu.memory_space<vmem>>, %arg6: memref<1x128xf32, #tpu.memory_space<vmem>>, %arg7: memref<8x8x128xf32, #tpu.memory_space<vmem>>, %arg8: memref<8x128xf32, #tpu.memory_space<vmem>>) attributes {dimension_semantics = [#tpu.dimension_semantics<arbitrary>], iteration_bounds = array<i64: 2>, scalar_prefetch = 0 : i64, scratch_operands = 1 : i64, tpu.core_type = #tpu.core_type<tc>, window_params = [{transform_indices = @transform_0, window_bounds = array<i64: 8, 8, 384>}, {transform_indices = @transform_1, window_bounds = array<i64: 8, 8, 384>}, {pipeline_mode = #tpu.pipeline_mode<synchronous>, transform_indices = @transform_2, window_bounds = array<i64: 128, 256>}, {pipeline_mode = #tpu.pipeline_mode<synchronous>, transform_indices = @transform_3, window_bounds = array<i64: 1, 256>}, {pipeline_mode = #tpu.pipeline_mode<synchronous>, transform_indices = @transform_4, window_bounds = array<i64: 128, 128>}, {pipeline_mode = #tpu.pipeline_mode<synchronous>, transform_indices = @transform_5, window_bounds = array<i64: 1, 128>}, {transform_indices = @transform_6, window_bounds = array<i64: 8, 8, 128>}]} {
    %c0_i32 = arith.constant 0 : i32
    %0 = arith.cmpi eq, %arg0, %c0_i32 : i32
    %1 = arith.extui %0 : i1 to i32
    %c0_i32_0 = arith.constant 0 : i32
    %2 = arith.cmpi ne, %1, %c0_i32_0 : i32
    scf.if %2 {
      %cst_176 = arith.constant 0.000000e+00 : f32
      %503 = vector.broadcast %cst_176 : f32 to vector<8x128xf32>
      %c0_177 = arith.constant 0 : index
      %c0_178 = arith.constant 0 : index
      %504 = vector.load %arg8[%c0_177, %c0_178] : memref<8x128xf32, #tpu.memory_space<vmem>>, vector<8x128xf32>
      tpu.vector_store %arg8[%c0_177, %c0_178], %503 {strides = array<i32>} : memref<8x128xf32, #tpu.memory_space<vmem>>, vector<8x128xf32>,
    } else {
    }
    %c0 = arith.constant 0 : index
    %c0_1 = arith.constant 0 : index
    %3 = vector.load %arg3[%c0, %c0_1] : memref<128x256xf32, #tpu.memory_space<vmem>>, vector<128x256xf32>
    %c0_2 = arith.constant 0 : index
    %c0_3 = arith.constant 0 : index
    %4 = vector.load %arg4[%c0_2, %c0_3] : memref<1x256xf32, #tpu.memory_space<vmem>>, vector<1x256xf32>
    %c0_4 = arith.constant 0 : index
    %c0_5 = arith.constant 0 : index
    %5 = vector.load %arg5[%c0_4, %c0_5] : memref<128x128xf32, #tpu.memory_space<vmem>>, vector<128x128xf32>
    %c0_6 = arith.constant 0 : index
    %c0_7 = arith.constant 0 : index
    %6 = vector.load %arg6[%c0_6, %c0_7] : memref<1x128xf32, #tpu.memory_space<vmem>>, vector<1x128xf32>
    %c0_8 = arith.constant 0 : index
    %c0_9 = arith.constant 0 : index
    %7 = vector.load %arg8[%c0_8, %c0_9] : memref<8x128xf32, #tpu.memory_space<vmem>>, vector<8x128xf32>
    %c0_10 = arith.constant 0 : index
    %c0_11 = arith.constant 0 : index
    %c0_12 = arith.constant 0 : index
    %8 = vector.load %arg1[%c0_10, %c0_11, %c0_12] : memref<8x8x384xf32, #tpu.memory_space<vmem>>, vector<1x8x384xf32>
    %9 = vector.shape_cast %8 : vector<1x8x384xf32> to vector<8x384xf32>
    %c0_13 = arith.constant 0 : index
    %c0_14 = arith.constant 0 : index
    %c0_15 = arith.constant 0 : index
    %10 = vector.load %arg2[%c0_13, %c0_14, %c0_15] : memref<8x8x384xf32, #tpu.memory_space<vmem>>, vector<1x8x384xf32>
    %11 = vector.shape_cast %10 : vector<1x8x384xf32> to vector<8x384xf32>
    %cst = arith.constant dense<0.000000e+00> : vector<8x256xf32>
    %12 = tpu.matmul %7, %3, %cst {dimension_numbers = #tpu.dot_dimension_numbers<[1], [0], [0], [1], [0, 0, 1, 1], [], []>} : vector<8x128xf32>, vector<128x256xf32>, vector<8x256xf32> -> vector<8x256xf32>
    %13 = vector.broadcast %4 : vector<1x256xf32> to vector<8x256xf32>
    %14 = arith.addf %12, %13 : vector<8x256xf32>
    %15 = vector.extract_strided_slice %14 {offsets = [0, 0], sizes = [8, 128], strides = [1, 1]} : vector<8x256xf32> to vector<8x128xf32>
    %16 = vector.extract_strided_slice %14 {offsets = [0, 128], sizes = [8, 128], strides = [1, 1]} : vector<8x256xf32> to vector<8x128xf32>
    %17 = vector.extract_strided_slice %9 {offsets = [0, 0], sizes = [8, 128], strides = [1, 1]} : vector<8x384xf32> to vector<8x128xf32>
    %18 = arith.addf %17, %15 : vector<8x128xf32>
    %19 = arith.negf %18 : vector<8x128xf32>
    %20 = math.exp %19 : vector<8x128xf32>
    %cst_16 = arith.constant 1.000000e+00 : f32
    %21 = vector.broadcast %cst_16 : f32 to vector<8x128xf32>
    %22 = arith.addf %21, %20 : vector<8x128xf32>
    %23 = arith.divf %21, %22 : vector<8x128xf32>
    %24 = vector.extract_strided_slice %11 {offsets = [0, 0], sizes = [8, 128], strides = [1, 1]} : vector<8x384xf32> to vector<8x128xf32>
    %25 = arith.addf %24, %15 : vector<8x128xf32>
    %26 = arith.negf %25 : vector<8x128xf32>
    %27 = math.exp %26 : vector<8x128xf32>
    %cst_17 = arith.constant 1.000000e+00 : f32
    %28 = vector.broadcast %cst_17 : f32 to vector<8x128xf32>
    %29 = arith.addf %28, %27 : vector<8x128xf32>
    %30 = arith.divf %28, %29 : vector<8x128xf32>
    %31 = arith.addf %23, %30 : vector<8x128xf32>
    %cst_18 = arith.constant 5.000000e-01 : f32
    %32 = vector.broadcast %cst_18 : f32 to vector<8x128xf32>
    %33 = arith.mulf %32, %31 : vector<8x128xf32>
    %34 = vector.extract_strided_slice %9 {offsets = [0, 128], sizes = [8, 128], strides = [1, 1]} : vector<8x384xf32> to vector<8x128xf32>
    %35 = arith.addf %34, %16 : vector<8x128xf32>
    %36 = arith.negf %35 : vector<8x128xf32>
    %37 = math.exp %36 : vector<8x128xf32>
    %cst_19 = arith.constant 1.000000e+00 : f32
    %38 = vector.broadcast %cst_19 : f32 to vector<8x128xf32>
    %39 = arith.addf %38, %37 : vector<8x128xf32>
    %40 = arith.divf %38, %39 : vector<8x128xf32>
    %41 = vector.extract_strided_slice %11 {offsets = [0, 128], sizes = [8, 128], strides = [1, 1]} : vector<8x384xf32> to vector<8x128xf32>
    %42 = arith.addf %41, %16 : vector<8x128xf32>
    %43 = arith.negf %42 : vector<8x128xf32>
    %44 = math.exp %43 : vector<8x128xf32>
    %cst_20 = arith.constant 1.000000e+00 : f32
    %45 = vector.broadcast %cst_20 : f32 to vector<8x128xf32>
    %46 = arith.addf %45, %44 : vector<8x128xf32>
    %47 = arith.divf %45, %46 : vector<8x128xf32>
    %48 = arith.addf %40, %47 : vector<8x128xf32>
    %cst_21 = arith.constant 5.000000e-01 : f32
    %49 = vector.broadcast %cst_21 : f32 to vector<8x128xf32>
    %50 = arith.mulf %49, %48 : vector<8x128xf32>
    %51 = arith.mulf %33, %7 : vector<8x128xf32>
    %cst_22 = arith.constant dense<0.000000e+00> : vector<8x128xf32>
    %52 = tpu.matmul %51, %5, %cst_22 {dimension_numbers = #tpu.dot_dimension_numbers<[1], [0], [0], [1], [0, 0, 1, 1], [], []>} : vector<8x128xf32>, vector<128x128xf32>, vector<8x128xf32> -> vector<8x128xf32>
    %53 = vector.broadcast %6 : vector<1x128xf32> to vector<8x128xf32>
    %54 = arith.addf %52, %53 : vector<8x128xf32>
    %55 = vector.extract_strided_slice %9 {offsets = [0, 256], sizes = [8, 128], strides = [1, 1]} : vector<8x384xf32> to vector<8x128xf32>
    %56 = vector.extract_strided_slice %11 {offsets = [0, 256], sizes = [8, 128], strides = [1, 1]} : vector<8x384xf32> to vector<8x128xf32>
    %57 = arith.addf %55, %56 : vector<8x128xf32>
    %58 = arith.addf %57, %54 : vector<8x128xf32>
    %59 = math.tanh %58 : vector<8x128xf32>
    %cst_23 = arith.constant 1.000000e+00 : f32
    %60 = vector.broadcast %cst_23 : f32 to vector<8x128xf32>
    %61 = arith.subf %60, %50 : vector<8x128xf32>
    %62 = arith.mulf %61, %59 : vector<8x128xf32>
    %63 = arith.mulf %50, %7 : vector<8x128xf32>
    %64 = arith.addf %62, %63 : vector<8x128xf32>
    %c0_24 = arith.constant 0 : index
    %c0_25 = arith.constant 0 : index
    %65 = vector.load %arg8[%c0_24, %c0_25] : memref<8x128xf32, #tpu.memory_space<vmem>>, vector<8x128xf32>
    tpu.vector_store %arg8[%c0_24, %c0_25], %64 {strides = array<i32>} : memref<8x128xf32, #tpu.memory_space<vmem>>, vector<8x128xf32>,
    %c0_26 = arith.constant 0 : index
    %c0_27 = arith.constant 0 : index
    %c0_28 = arith.constant 0 : index
    %66 = vector.load %arg7[%c0_26, %c0_27, %c0_28] : memref<8x8x128xf32, #tpu.memory_space<vmem>>, vector<1x8x128xf32>
    %67 = vector.shape_cast %66 : vector<1x8x128xf32> to vector<8x128xf32>
    %68 = vector.shape_cast %64 : vector<8x128xf32> to vector<1x8x128xf32>
    tpu.vector_store %arg7[%c0_26, %c0_27, %c0_28], %68 {strides = array<i32>} : memref<8x8x128xf32, #tpu.memory_space<vmem>>, vector<1x8x128xf32>,
    %c0_29 = arith.constant 0 : index
    %c0_30 = arith.constant 0 : index
    %69 = vector.load %arg8[%c0_29, %c0_30] : memref<8x128xf32, #tpu.memory_space<vmem>>, vector<8x128xf32>
    %c1 = arith.constant 1 : index
    %c0_31 = arith.constant 0 : index
    %c0_32 = arith.constant 0 : index
    %70 = vector.load %arg1[%c1, %c0_31, %c0_32] : memref<8x8x384xf32, #tpu.memory_space<vmem>>, vector<1x8x384xf32>
    %71 = vector.shape_cast %70 : vector<1x8x384xf32> to vector<8x384xf32>
    %c1_33 = arith.constant 1 : index
    %c0_34 = arith.constant 0 : index
    %c0_35 = arith.constant 0 : index
    %72 = vector.load %arg2[%c1_33, %c0_34, %c0_35] : memref<8x8x384xf32, #tpu.memory_space<vmem>>, vector<1x8x384xf32>
    %73 = vector.shape_cast %72 : vector<1x8x384xf32> to vector<8x384xf32>
    %cst_36 = arith.constant dense<0.000000e+00> : vector<8x256xf32>
    %74 = tpu.matmul %69, %3, %cst_36 {dimension_numbers = #tpu.dot_dimension_numbers<[1], [0], [0], [1], [0, 0, 1, 1], [], []>} : vector<8x128xf32>, vector<128x256xf32>, vector<8x256xf32> -> vector<8x256xf32>
    %75 = vector.broadcast %4 : vector<1x256xf32> to vector<8x256xf32>
    %76 = arith.addf %74, %75 : vector<8x256xf32>
    %77 = vector.extract_strided_slice %76 {offsets = [0, 0], sizes = [8, 128], strides = [1, 1]} : vector<8x256xf32> to vector<8x128xf32>
    %78 = vector.extract_strided_slice %76 {offsets = [0, 128], sizes = [8, 128], strides = [1, 1]} : vector<8x256xf32> to vector<8x128xf32>
    %79 = vector.extract_strided_slice %71 {offsets = [0, 0], sizes = [8, 128], strides = [1, 1]} : vector<8x384xf32> to vector<8x128xf32>
    %80 = arith.addf %79, %77 : vector<8x128xf32>
    %81 = arith.negf %80 : vector<8x128xf32>
    %82 = math.exp %81 : vector<8x128xf32>
    %cst_37 = arith.constant 1.000000e+00 : f32
    %83 = vector.broadcast %cst_37 : f32 to vector<8x128xf32>
    %84 = arith.addf %83, %82 : vector<8x128xf32>
    %85 = arith.divf %83, %84 : vector<8x128xf32>
    %86 = vector.extract_strided_slice %73 {offsets = [0, 0], sizes = [8, 128], strides = [1, 1]} : vector<8x384xf32> to vector<8x128xf32>
    %87 = arith.addf %86, %77 : vector<8x128xf32>
    %88 = arith.negf %87 : vector<8x128xf32>
    %89 = math.exp %88 : vector<8x128xf32>
    %cst_38 = arith.constant 1.000000e+00 : f32
    %90 = vector.broadcast %cst_38 : f32 to vector<8x128xf32>
    %91 = arith.addf %90, %89 : vector<8x128xf32>
    %92 = arith.divf %90, %91 : vector<8x128xf32>
    %93 = arith.addf %85, %92 : vector<8x128xf32>
    %cst_39 = arith.constant 5.000000e-01 : f32
    %94 = vector.broadcast %cst_39 : f32 to vector<8x128xf32>
    %95 = arith.mulf %94, %93 : vector<8x128xf32>
    %96 = vector.extract_strided_slice %71 {offsets = [0, 128], sizes = [8, 128], strides = [1, 1]} : vector<8x384xf32> to vector<8x128xf32>
    %97 = arith.addf %96, %78 : vector<8x128xf32>
    %98 = arith.negf %97 : vector<8x128xf32>
    %99 = math.exp %98 : vector<8x128xf32>
    %cst_40 = arith.constant 1.000000e+00 : f32
    %100 = vector.broadcast %cst_40 : f32 to vector<8x128xf32>
    %101 = arith.addf %100, %99 : vector<8x128xf32>
    %102 = arith.divf %100, %101 : vector<8x128xf32>
    %103 = vector.extract_strided_slice %73 {offsets = [0, 128], sizes = [8, 128], strides = [1, 1]} : vector<8x384xf32> to vector<8x128xf32>
    %104 = arith.addf %103, %78 : vector<8x128xf32>
    %105 = arith.negf %104 : vector<8x128xf32>
    %106 = math.exp %105 : vector<8x128xf32>
    %cst_41 = arith.constant 1.000000e+00 : f32
    %107 = vector.broadcast %cst_41 : f32 to vector<8x128xf32>
    %108 = arith.addf %107, %106 : vector<8x128xf32>
    %109 = arith.divf %107, %108 : vector<8x128xf32>
    %110 = arith.addf %102, %109 : vector<8x128xf32>
    %cst_42 = arith.constant 5.000000e-01 : f32
    %111 = vector.broadcast %cst_42 : f32 to vector<8x128xf32>
    %112 = arith.mulf %111, %110 : vector<8x128xf32>
    %113 = arith.mulf %95, %69 : vector<8x128xf32>
    %cst_43 = arith.constant dense<0.000000e+00> : vector<8x128xf32>
    %114 = tpu.matmul %113, %5, %cst_43 {dimension_numbers = #tpu.dot_dimension_numbers<[1], [0], [0], [1], [0, 0, 1, 1], [], []>} : vector<8x128xf32>, vector<128x128xf32>, vector<8x128xf32> -> vector<8x128xf32>
    %115 = vector.broadcast %6 : vector<1x128xf32> to vector<8x128xf32>
    %116 = arith.addf %114, %115 : vector<8x128xf32>
    %117 = vector.extract_strided_slice %71 {offsets = [0, 256], sizes = [8, 128], strides = [1, 1]} : vector<8x384xf32> to vector<8x128xf32>
    %118 = vector.extract_strided_slice %73 {offsets = [0, 256], sizes = [8, 128], strides = [1, 1]} : vector<8x384xf32> to vector<8x128xf32>
    %119 = arith.addf %117, %118 : vector<8x128xf32>
    %120 = arith.addf %119, %116 : vector<8x128xf32>
    %121 = math.tanh %120 : vector<8x128xf32>
    %cst_44 = arith.constant 1.000000e+00 : f32
    %122 = vector.broadcast %cst_44 : f32 to vector<8x128xf32>
    %123 = arith.subf %122, %112 : vector<8x128xf32>
    %124 = arith.mulf %123, %121 : vector<8x128xf32>
    %125 = arith.mulf %112, %69 : vector<8x128xf32>
    %126 = arith.addf %124, %125 : vector<8x128xf32>
    %c0_45 = arith.constant 0 : index
    %c0_46 = arith.constant 0 : index
    %127 = vector.load %arg8[%c0_45, %c0_46] : memref<8x128xf32, #tpu.memory_space<vmem>>, vector<8x128xf32>
    tpu.vector_store %arg8[%c0_45, %c0_46], %126 {strides = array<i32>} : memref<8x128xf32, #tpu.memory_space<vmem>>, vector<8x128xf32>,
    %c1_47 = arith.constant 1 : index
    %c0_48 = arith.constant 0 : index
    %c0_49 = arith.constant 0 : index
    %128 = vector.load %arg7[%c1_47, %c0_48, %c0_49] : memref<8x8x128xf32, #tpu.memory_space<vmem>>, vector<1x8x128xf32>
    %129 = vector.shape_cast %128 : vector<1x8x128xf32> to vector<8x128xf32>
    %130 = vector.shape_cast %126 : vector<8x128xf32> to vector<1x8x128xf32>
    tpu.vector_store %arg7[%c1_47, %c0_48, %c0_49], %130 {strides = array<i32>} : memref<8x8x128xf32, #tpu.memory_space<vmem>>, vector<1x8x128xf32>,
    %c0_50 = arith.constant 0 : index
    %c0_51 = arith.constant 0 : index
    %131 = vector.load %arg8[%c0_50, %c0_51] : memref<8x128xf32, #tpu.memory_space<vmem>>, vector<8x128xf32>
    %c2 = arith.constant 2 : index
    %c0_52 = arith.constant 0 : index
    %c0_53 = arith.constant 0 : index
    %132 = vector.load %arg1[%c2, %c0_52, %c0_53] : memref<8x8x384xf32, #tpu.memory_space<vmem>>, vector<1x8x384xf32>
    %133 = vector.shape_cast %132 : vector<1x8x384xf32> to vector<8x384xf32>
    %c2_54 = arith.constant 2 : index
    %c0_55 = arith.constant 0 : index
    %c0_56 = arith.constant 0 : index
    %134 = vector.load %arg2[%c2_54, %c0_55, %c0_56] : memref<8x8x384xf32, #tpu.memory_space<vmem>>, vector<1x8x384xf32>
    %135 = vector.shape_cast %134 : vector<1x8x384xf32> to vector<8x384xf32>
    %cst_57 = arith.constant dense<0.000000e+00> : vector<8x256xf32>
    %136 = tpu.matmul %131, %3, %cst_57 {dimension_numbers = #tpu.dot_dimension_numbers<[1], [0], [0], [1], [0, 0, 1, 1], [], []>} : vector<8x128xf32>, vector<128x256xf32>, vector<8x256xf32> -> vector<8x256xf32>
    %137 = vector.broadcast %4 : vector<1x256xf32> to vector<8x256xf32>
    %138 = arith.addf %136, %137 : vector<8x256xf32>
    %139 = vector.extract_strided_slice %138 {offsets = [0, 0], sizes = [8, 128], strides = [1, 1]} : vector<8x256xf32> to vector<8x128xf32>
    %140 = vector.extract_strided_slice %138 {offsets = [0, 128], sizes = [8, 128], strides = [1, 1]} : vector<8x256xf32> to vector<8x128xf32>
    %141 = vector.extract_strided_slice %133 {offsets = [0, 0], sizes = [8, 128], strides = [1, 1]} : vector<8x384xf32> to vector<8x128xf32>
    %142 = arith.addf %141, %139 : vector<8x128xf32>
    %143 = arith.negf %142 : vector<8x128xf32>
    %144 = math.exp %143 : vector<8x128xf32>
    %cst_58 = arith.constant 1.000000e+00 : f32
    %145 = vector.broadcast %cst_58 : f32 to vector<8x128xf32>
    %146 = arith.addf %145, %144 : vector<8x128xf32>
    %147 = arith.divf %145, %146 : vector<8x128xf32>
    %148 = vector.extract_strided_slice %135 {offsets = [0, 0], sizes = [8, 128], strides = [1, 1]} : vector<8x384xf32> to vector<8x128xf32>
    %149 = arith.addf %148, %139 : vector<8x128xf32>
    %150 = arith.negf %149 : vector<8x128xf32>
    %151 = math.exp %150 : vector<8x128xf32>
    %cst_59 = arith.constant 1.000000e+00 : f32
    %152 = vector.broadcast %cst_59 : f32 to vector<8x128xf32>
    %153 = arith.addf %152, %151 : vector<8x128xf32>
    %154 = arith.divf %152, %153 : vector<8x128xf32>
    %155 = arith.addf %147, %154 : vector<8x128xf32>
    %cst_60 = arith.constant 5.000000e-01 : f32
    %156 = vector.broadcast %cst_60 : f32 to vector<8x128xf32>
    %157 = arith.mulf %156, %155 : vector<8x128xf32>
    %158 = vector.extract_strided_slice %133 {offsets = [0, 128], sizes = [8, 128], strides = [1, 1]} : vector<8x384xf32> to vector<8x128xf32>
    %159 = arith.addf %158, %140 : vector<8x128xf32>
    %160 = arith.negf %159 : vector<8x128xf32>
    %161 = math.exp %160 : vector<8x128xf32>
    %cst_61 = arith.constant 1.000000e+00 : f32
    %162 = vector.broadcast %cst_61 : f32 to vector<8x128xf32>
    %163 = arith.addf %162, %161 : vector<8x128xf32>
    %164 = arith.divf %162, %163 : vector<8x128xf32>
    %165 = vector.extract_strided_slice %135 {offsets = [0, 128], sizes = [8, 128], strides = [1, 1]} : vector<8x384xf32> to vector<8x128xf32>
    %166 = arith.addf %165, %140 : vector<8x128xf32>
    %167 = arith.negf %166 : vector<8x128xf32>
    %168 = math.exp %167 : vector<8x128xf32>
    %cst_62 = arith.constant 1.000000e+00 : f32
    %169 = vector.broadcast %cst_62 : f32 to vector<8x128xf32>
    %170 = arith.addf %169, %168 : vector<8x128xf32>
    %171 = arith.divf %169, %170 : vector<8x128xf32>
    %172 = arith.addf %164, %171 : vector<8x128xf32>
    %cst_63 = arith.constant 5.000000e-01 : f32
    %173 = vector.broadcast %cst_63 : f32 to vector<8x128xf32>
    %174 = arith.mulf %173, %172 : vector<8x128xf32>
    %175 = arith.mulf %157, %131 : vector<8x128xf32>
    %cst_64 = arith.constant dense<0.000000e+00> : vector<8x128xf32>
    %176 = tpu.matmul %175, %5, %cst_64 {dimension_numbers = #tpu.dot_dimension_numbers<[1], [0], [0], [1], [0, 0, 1, 1], [], []>} : vector<8x128xf32>, vector<128x128xf32>, vector<8x128xf32> -> vector<8x128xf32>
    %177 = vector.broadcast %6 : vector<1x128xf32> to vector<8x128xf32>
    %178 = arith.addf %176, %177 : vector<8x128xf32>
    %179 = vector.extract_strided_slice %133 {offsets = [0, 256], sizes = [8, 128], strides = [1, 1]} : vector<8x384xf32> to vector<8x128xf32>
    %180 = vector.extract_strided_slice %135 {offsets = [0, 256], sizes = [8, 128], strides = [1, 1]} : vector<8x384xf32> to vector<8x128xf32>
    %181 = arith.addf %179, %180 : vector<8x128xf32>
    %182 = arith.addf %181, %178 : vector<8x128xf32>
    %183 = math.tanh %182 : vector<8x128xf32>
    %cst_65 = arith.constant 1.000000e+00 : f32
    %184 = vector.broadcast %cst_65 : f32 to vector<8x128xf32>
    %185 = arith.subf %184, %174 : vector<8x128xf32>
    %186 = arith.mulf %185, %183 : vector<8x128xf32>
    %187 = arith.mulf %174, %131 : vector<8x128xf32>
    %188 = arith.addf %186, %187 : vector<8x128xf32>
    %c0_66 = arith.constant 0 : index
    %c0_67 = arith.constant 0 : index
    %189 = vector.load %arg8[%c0_66, %c0_67] : memref<8x128xf32, #tpu.memory_space<vmem>>, vector<8x128xf32>
    tpu.vector_store %arg8[%c0_66, %c0_67], %188 {strides = array<i32>} : memref<8x128xf32, #tpu.memory_space<vmem>>, vector<8x128xf32>,
    %c2_68 = arith.constant 2 : index
    %c0_69 = arith.constant 0 : index
    %c0_70 = arith.constant 0 : index
    %190 = vector.load %arg7[%c2_68, %c0_69, %c0_70] : memref<8x8x128xf32, #tpu.memory_space<vmem>>, vector<1x8x128xf32>
    %191 = vector.shape_cast %190 : vector<1x8x128xf32> to vector<8x128xf32>
    %192 = vector.shape_cast %188 : vector<8x128xf32> to vector<1x8x128xf32>
    tpu.vector_store %arg7[%c2_68, %c0_69, %c0_70], %192 {strides = array<i32>} : memref<8x8x128xf32, #tpu.memory_space<vmem>>, vector<1x8x128xf32>,
    %c0_71 = arith.constant 0 : index
    %c0_72 = arith.constant 0 : index
    %193 = vector.load %arg8[%c0_71, %c0_72] : memref<8x128xf32, #tpu.memory_space<vmem>>, vector<8x128xf32>
    %c3 = arith.constant 3 : index
    %c0_73 = arith.constant 0 : index
    %c0_74 = arith.constant 0 : index
    %194 = vector.load %arg1[%c3, %c0_73, %c0_74] : memref<8x8x384xf32, #tpu.memory_space<vmem>>, vector<1x8x384xf32>
    %195 = vector.shape_cast %194 : vector<1x8x384xf32> to vector<8x384xf32>
    %c3_75 = arith.constant 3 : index
    %c0_76 = arith.constant 0 : index
    %c0_77 = arith.constant 0 : index
    %196 = vector.load %arg2[%c3_75, %c0_76, %c0_77] : memref<8x8x384xf32, #tpu.memory_space<vmem>>, vector<1x8x384xf32>
    %197 = vector.shape_cast %196 : vector<1x8x384xf32> to vector<8x384xf32>
    %cst_78 = arith.constant dense<0.000000e+00> : vector<8x256xf32>
    %198 = tpu.matmul %193, %3, %cst_78 {dimension_numbers = #tpu.dot_dimension_numbers<[1], [0], [0], [1], [0, 0, 1, 1], [], []>} : vector<8x128xf32>, vector<128x256xf32>, vector<8x256xf32> -> vector<8x256xf32>
    %199 = vector.broadcast %4 : vector<1x256xf32> to vector<8x256xf32>
    %200 = arith.addf %198, %199 : vector<8x256xf32>
    %201 = vector.extract_strided_slice %200 {offsets = [0, 0], sizes = [8, 128], strides = [1, 1]} : vector<8x256xf32> to vector<8x128xf32>
    %202 = vector.extract_strided_slice %200 {offsets = [0, 128], sizes = [8, 128], strides = [1, 1]} : vector<8x256xf32> to vector<8x128xf32>
    %203 = vector.extract_strided_slice %195 {offsets = [0, 0], sizes = [8, 128], strides = [1, 1]} : vector<8x384xf32> to vector<8x128xf32>
    %204 = arith.addf %203, %201 : vector<8x128xf32>
    %205 = arith.negf %204 : vector<8x128xf32>
    %206 = math.exp %205 : vector<8x128xf32>
    %cst_79 = arith.constant 1.000000e+00 : f32
    %207 = vector.broadcast %cst_79 : f32 to vector<8x128xf32>
    %208 = arith.addf %207, %206 : vector<8x128xf32>
    %209 = arith.divf %207, %208 : vector<8x128xf32>
    %210 = vector.extract_strided_slice %197 {offsets = [0, 0], sizes = [8, 128], strides = [1, 1]} : vector<8x384xf32> to vector<8x128xf32>
    %211 = arith.addf %210, %201 : vector<8x128xf32>
    %212 = arith.negf %211 : vector<8x128xf32>
    %213 = math.exp %212 : vector<8x128xf32>
    %cst_80 = arith.constant 1.000000e+00 : f32
    %214 = vector.broadcast %cst_80 : f32 to vector<8x128xf32>
    %215 = arith.addf %214, %213 : vector<8x128xf32>
    %216 = arith.divf %214, %215 : vector<8x128xf32>
    %217 = arith.addf %209, %216 : vector<8x128xf32>
    %cst_81 = arith.constant 5.000000e-01 : f32
    %218 = vector.broadcast %cst_81 : f32 to vector<8x128xf32>
    %219 = arith.mulf %218, %217 : vector<8x128xf32>
    %220 = vector.extract_strided_slice %195 {offsets = [0, 128], sizes = [8, 128], strides = [1, 1]} : vector<8x384xf32> to vector<8x128xf32>
    %221 = arith.addf %220, %202 : vector<8x128xf32>
    %222 = arith.negf %221 : vector<8x128xf32>
    %223 = math.exp %222 : vector<8x128xf32>
    %cst_82 = arith.constant 1.000000e+00 : f32
    %224 = vector.broadcast %cst_82 : f32 to vector<8x128xf32>
    %225 = arith.addf %224, %223 : vector<8x128xf32>
    %226 = arith.divf %224, %225 : vector<8x128xf32>
    %227 = vector.extract_strided_slice %197 {offsets = [0, 128], sizes = [8, 128], strides = [1, 1]} : vector<8x384xf32> to vector<8x128xf32>
    %228 = arith.addf %227, %202 : vector<8x128xf32>
    %229 = arith.negf %228 : vector<8x128xf32>
    %230 = math.exp %229 : vector<8x128xf32>
    %cst_83 = arith.constant 1.000000e+00 : f32
    %231 = vector.broadcast %cst_83 : f32 to vector<8x128xf32>
    %232 = arith.addf %231, %230 : vector<8x128xf32>
    %233 = arith.divf %231, %232 : vector<8x128xf32>
    %234 = arith.addf %226, %233 : vector<8x128xf32>
    %cst_84 = arith.constant 5.000000e-01 : f32
    %235 = vector.broadcast %cst_84 : f32 to vector<8x128xf32>
    %236 = arith.mulf %235, %234 : vector<8x128xf32>
    %237 = arith.mulf %219, %193 : vector<8x128xf32>
    %cst_85 = arith.constant dense<0.000000e+00> : vector<8x128xf32>
    %238 = tpu.matmul %237, %5, %cst_85 {dimension_numbers = #tpu.dot_dimension_numbers<[1], [0], [0], [1], [0, 0, 1, 1], [], []>} : vector<8x128xf32>, vector<128x128xf32>, vector<8x128xf32> -> vector<8x128xf32>
    %239 = vector.broadcast %6 : vector<1x128xf32> to vector<8x128xf32>
    %240 = arith.addf %238, %239 : vector<8x128xf32>
    %241 = vector.extract_strided_slice %195 {offsets = [0, 256], sizes = [8, 128], strides = [1, 1]} : vector<8x384xf32> to vector<8x128xf32>
    %242 = vector.extract_strided_slice %197 {offsets = [0, 256], sizes = [8, 128], strides = [1, 1]} : vector<8x384xf32> to vector<8x128xf32>
    %243 = arith.addf %241, %242 : vector<8x128xf32>
    %244 = arith.addf %243, %240 : vector<8x128xf32>
    %245 = math.tanh %244 : vector<8x128xf32>
    %cst_86 = arith.constant 1.000000e+00 : f32
    %246 = vector.broadcast %cst_86 : f32 to vector<8x128xf32>
    %247 = arith.subf %246, %236 : vector<8x128xf32>
    %248 = arith.mulf %247, %245 : vector<8x128xf32>
    %249 = arith.mulf %236, %193 : vector<8x128xf32>
    %250 = arith.addf %248, %249 : vector<8x128xf32>
    %c0_87 = arith.constant 0 : index
    %c0_88 = arith.constant 0 : index
    %251 = vector.load %arg8[%c0_87, %c0_88] : memref<8x128xf32, #tpu.memory_space<vmem>>, vector<8x128xf32>
    tpu.vector_store %arg8[%c0_87, %c0_88], %250 {strides = array<i32>} : memref<8x128xf32, #tpu.memory_space<vmem>>, vector<8x128xf32>,
    %c3_89 = arith.constant 3 : index
    %c0_90 = arith.constant 0 : index
    %c0_91 = arith.constant 0 : index
    %252 = vector.load %arg7[%c3_89, %c0_90, %c0_91] : memref<8x8x128xf32, #tpu.memory_space<vmem>>, vector<1x8x128xf32>
    %253 = vector.shape_cast %252 : vector<1x8x128xf32> to vector<8x128xf32>
    %254 = vector.shape_cast %250 : vector<8x128xf32> to vector<1x8x128xf32>
    tpu.vector_store %arg7[%c3_89, %c0_90, %c0_91], %254 {strides = array<i32>} : memref<8x8x128xf32, #tpu.memory_space<vmem>>, vector<1x8x128xf32>,
    %c0_92 = arith.constant 0 : index
    %c0_93 = arith.constant 0 : index
    %255 = vector.load %arg8[%c0_92, %c0_93] : memref<8x128xf32, #tpu.memory_space<vmem>>, vector<8x128xf32>
    %c4 = arith.constant 4 : index
    %c0_94 = arith.constant 0 : index
    %c0_95 = arith.constant 0 : index
    %256 = vector.load %arg1[%c4, %c0_94, %c0_95] : memref<8x8x384xf32, #tpu.memory_space<vmem>>, vector<1x8x384xf32>
    %257 = vector.shape_cast %256 : vector<1x8x384xf32> to vector<8x384xf32>
    %c4_96 = arith.constant 4 : index
    %c0_97 = arith.constant 0 : index
    %c0_98 = arith.constant 0 : index
    %258 = vector.load %arg2[%c4_96, %c0_97, %c0_98] : memref<8x8x384xf32, #tpu.memory_space<vmem>>, vector<1x8x384xf32>
    %259 = vector.shape_cast %258 : vector<1x8x384xf32> to vector<8x384xf32>
    %cst_99 = arith.constant dense<0.000000e+00> : vector<8x256xf32>
    %260 = tpu.matmul %255, %3, %cst_99 {dimension_numbers = #tpu.dot_dimension_numbers<[1], [0], [0], [1], [0, 0, 1, 1], [], []>} : vector<8x128xf32>, vector<128x256xf32>, vector<8x256xf32> -> vector<8x256xf32>
    %261 = vector.broadcast %4 : vector<1x256xf32> to vector<8x256xf32>
    %262 = arith.addf %260, %261 : vector<8x256xf32>
    %263 = vector.extract_strided_slice %262 {offsets = [0, 0], sizes = [8, 128], strides = [1, 1]} : vector<8x256xf32> to vector<8x128xf32>
    %264 = vector.extract_strided_slice %262 {offsets = [0, 128], sizes = [8, 128], strides = [1, 1]} : vector<8x256xf32> to vector<8x128xf32>
    %265 = vector.extract_strided_slice %257 {offsets = [0, 0], sizes = [8, 128], strides = [1, 1]} : vector<8x384xf32> to vector<8x128xf32>
    %266 = arith.addf %265, %263 : vector<8x128xf32>
    %267 = arith.negf %266 : vector<8x128xf32>
    %268 = math.exp %267 : vector<8x128xf32>
    %cst_100 = arith.constant 1.000000e+00 : f32
    %269 = vector.broadcast %cst_100 : f32 to vector<8x128xf32>
    %270 = arith.addf %269, %268 : vector<8x128xf32>
    %271 = arith.divf %269, %270 : vector<8x128xf32>
    %272 = vector.extract_strided_slice %259 {offsets = [0, 0], sizes = [8, 128], strides = [1, 1]} : vector<8x384xf32> to vector<8x128xf32>
    %273 = arith.addf %272, %263 : vector<8x128xf32>
    %274 = arith.negf %273 : vector<8x128xf32>
    %275 = math.exp %274 : vector<8x128xf32>
    %cst_101 = arith.constant 1.000000e+00 : f32
    %276 = vector.broadcast %cst_101 : f32 to vector<8x128xf32>
    %277 = arith.addf %276, %275 : vector<8x128xf32>
    %278 = arith.divf %276, %277 : vector<8x128xf32>
    %279 = arith.addf %271, %278 : vector<8x128xf32>
    %cst_102 = arith.constant 5.000000e-01 : f32
    %280 = vector.broadcast %cst_102 : f32 to vector<8x128xf32>
    %281 = arith.mulf %280, %279 : vector<8x128xf32>
    %282 = vector.extract_strided_slice %257 {offsets = [0, 128], sizes = [8, 128], strides = [1, 1]} : vector<8x384xf32> to vector<8x128xf32>
    %283 = arith.addf %282, %264 : vector<8x128xf32>
    %284 = arith.negf %283 : vector<8x128xf32>
    %285 = math.exp %284 : vector<8x128xf32>
    %cst_103 = arith.constant 1.000000e+00 : f32
    %286 = vector.broadcast %cst_103 : f32 to vector<8x128xf32>
    %287 = arith.addf %286, %285 : vector<8x128xf32>
    %288 = arith.divf %286, %287 : vector<8x128xf32>
    %289 = vector.extract_strided_slice %259 {offsets = [0, 128], sizes = [8, 128], strides = [1, 1]} : vector<8x384xf32> to vector<8x128xf32>
    %290 = arith.addf %289, %264 : vector<8x128xf32>
    %291 = arith.negf %290 : vector<8x128xf32>
    %292 = math.exp %291 : vector<8x128xf32>
    %cst_104 = arith.constant 1.000000e+00 : f32
    %293 = vector.broadcast %cst_104 : f32 to vector<8x128xf32>
    %294 = arith.addf %293, %292 : vector<8x128xf32>
    %295 = arith.divf %293, %294 : vector<8x128xf32>
    %296 = arith.addf %288, %295 : vector<8x128xf32>
    %cst_105 = arith.constant 5.000000e-01 : f32
    %297 = vector.broadcast %cst_105 : f32 to vector<8x128xf32>
    %298 = arith.mulf %297, %296 : vector<8x128xf32>
    %299 = arith.mulf %281, %255 : vector<8x128xf32>
    %cst_106 = arith.constant dense<0.000000e+00> : vector<8x128xf32>
    %300 = tpu.matmul %299, %5, %cst_106 {dimension_numbers = #tpu.dot_dimension_numbers<[1], [0], [0], [1], [0, 0, 1, 1], [], []>} : vector<8x128xf32>, vector<128x128xf32>, vector<8x128xf32> -> vector<8x128xf32>
    %301 = vector.broadcast %6 : vector<1x128xf32> to vector<8x128xf32>
    %302 = arith.addf %300, %301 : vector<8x128xf32>
    %303 = vector.extract_strided_slice %257 {offsets = [0, 256], sizes = [8, 128], strides = [1, 1]} : vector<8x384xf32> to vector<8x128xf32>
    %304 = vector.extract_strided_slice %259 {offsets = [0, 256], sizes = [8, 128], strides = [1, 1]} : vector<8x384xf32> to vector<8x128xf32>
    %305 = arith.addf %303, %304 : vector<8x128xf32>
    %306 = arith.addf %305, %302 : vector<8x128xf32>
    %307 = math.tanh %306 : vector<8x128xf32>
    %cst_107 = arith.constant 1.000000e+00 : f32
    %308 = vector.broadcast %cst_107 : f32 to vector<8x128xf32>
    %309 = arith.subf %308, %298 : vector<8x128xf32>
    %310 = arith.mulf %309, %307 : vector<8x128xf32>
    %311 = arith.mulf %298, %255 : vector<8x128xf32>
    %312 = arith.addf %310, %311 : vector<8x128xf32>
    %c0_108 = arith.constant 0 : index
    %c0_109 = arith.constant 0 : index
    %313 = vector.load %arg8[%c0_108, %c0_109] : memref<8x128xf32, #tpu.memory_space<vmem>>, vector<8x128xf32>
    tpu.vector_store %arg8[%c0_108, %c0_109], %312 {strides = array<i32>} : memref<8x128xf32, #tpu.memory_space<vmem>>, vector<8x128xf32>,
    %c4_110 = arith.constant 4 : index
    %c0_111 = arith.constant 0 : index
    %c0_112 = arith.constant 0 : index
    %314 = vector.load %arg7[%c4_110, %c0_111, %c0_112] : memref<8x8x128xf32, #tpu.memory_space<vmem>>, vector<1x8x128xf32>
    %315 = vector.shape_cast %314 : vector<1x8x128xf32> to vector<8x128xf32>
    %316 = vector.shape_cast %312 : vector<8x128xf32> to vector<1x8x128xf32>
    tpu.vector_store %arg7[%c4_110, %c0_111, %c0_112], %316 {strides = array<i32>} : memref<8x8x128xf32, #tpu.memory_space<vmem>>, vector<1x8x128xf32>,
    %c0_113 = arith.constant 0 : index
    %c0_114 = arith.constant 0 : index
    %317 = vector.load %arg8[%c0_113, %c0_114] : memref<8x128xf32, #tpu.memory_space<vmem>>, vector<8x128xf32>
    %c5 = arith.constant 5 : index
    %c0_115 = arith.constant 0 : index
    %c0_116 = arith.constant 0 : index
    %318 = vector.load %arg1[%c5, %c0_115, %c0_116] : memref<8x8x384xf32, #tpu.memory_space<vmem>>, vector<1x8x384xf32>
    %319 = vector.shape_cast %318 : vector<1x8x384xf32> to vector<8x384xf32>
    %c5_117 = arith.constant 5 : index
    %c0_118 = arith.constant 0 : index
    %c0_119 = arith.constant 0 : index
    %320 = vector.load %arg2[%c5_117, %c0_118, %c0_119] : memref<8x8x384xf32, #tpu.memory_space<vmem>>, vector<1x8x384xf32>
    %321 = vector.shape_cast %320 : vector<1x8x384xf32> to vector<8x384xf32>
    %cst_120 = arith.constant dense<0.000000e+00> : vector<8x256xf32>
    %322 = tpu.matmul %317, %3, %cst_120 {dimension_numbers = #tpu.dot_dimension_numbers<[1], [0], [0], [1], [0, 0, 1, 1], [], []>} : vector<8x128xf32>, vector<128x256xf32>, vector<8x256xf32> -> vector<8x256xf32>
    %323 = vector.broadcast %4 : vector<1x256xf32> to vector<8x256xf32>
    %324 = arith.addf %322, %323 : vector<8x256xf32>
    %325 = vector.extract_strided_slice %324 {offsets = [0, 0], sizes = [8, 128], strides = [1, 1]} : vector<8x256xf32> to vector<8x128xf32>
    %326 = vector.extract_strided_slice %324 {offsets = [0, 128], sizes = [8, 128], strides = [1, 1]} : vector<8x256xf32> to vector<8x128xf32>
    %327 = vector.extract_strided_slice %319 {offsets = [0, 0], sizes = [8, 128], strides = [1, 1]} : vector<8x384xf32> to vector<8x128xf32>
    %328 = arith.addf %327, %325 : vector<8x128xf32>
    %329 = arith.negf %328 : vector<8x128xf32>
    %330 = math.exp %329 : vector<8x128xf32>
    %cst_121 = arith.constant 1.000000e+00 : f32
    %331 = vector.broadcast %cst_121 : f32 to vector<8x128xf32>
    %332 = arith.addf %331, %330 : vector<8x128xf32>
    %333 = arith.divf %331, %332 : vector<8x128xf32>
    %334 = vector.extract_strided_slice %321 {offsets = [0, 0], sizes = [8, 128], strides = [1, 1]} : vector<8x384xf32> to vector<8x128xf32>
    %335 = arith.addf %334, %325 : vector<8x128xf32>
    %336 = arith.negf %335 : vector<8x128xf32>
    %337 = math.exp %336 : vector<8x128xf32>
    %cst_122 = arith.constant 1.000000e+00 : f32
    %338 = vector.broadcast %cst_122 : f32 to vector<8x128xf32>
    %339 = arith.addf %338, %337 : vector<8x128xf32>
    %340 = arith.divf %338, %339 : vector<8x128xf32>
    %341 = arith.addf %333, %340 : vector<8x128xf32>
    %cst_123 = arith.constant 5.000000e-01 : f32
    %342 = vector.broadcast %cst_123 : f32 to vector<8x128xf32>
    %343 = arith.mulf %342, %341 : vector<8x128xf32>
    %344 = vector.extract_strided_slice %319 {offsets = [0, 128], sizes = [8, 128], strides = [1, 1]} : vector<8x384xf32> to vector<8x128xf32>
    %345 = arith.addf %344, %326 : vector<8x128xf32>
    %346 = arith.negf %345 : vector<8x128xf32>
    %347 = math.exp %346 : vector<8x128xf32>
    %cst_124 = arith.constant 1.000000e+00 : f32
    %348 = vector.broadcast %cst_124 : f32 to vector<8x128xf32>
    %349 = arith.addf %348, %347 : vector<8x128xf32>
    %350 = arith.divf %348, %349 : vector<8x128xf32>
    %351 = vector.extract_strided_slice %321 {offsets = [0, 128], sizes = [8, 128], strides = [1, 1]} : vector<8x384xf32> to vector<8x128xf32>
    %352 = arith.addf %351, %326 : vector<8x128xf32>
    %353 = arith.negf %352 : vector<8x128xf32>
    %354 = math.exp %353 : vector<8x128xf32>
    %cst_125 = arith.constant 1.000000e+00 : f32
    %355 = vector.broadcast %cst_125 : f32 to vector<8x128xf32>
    %356 = arith.addf %355, %354 : vector<8x128xf32>
    %357 = arith.divf %355, %356 : vector<8x128xf32>
    %358 = arith.addf %350, %357 : vector<8x128xf32>
    %cst_126 = arith.constant 5.000000e-01 : f32
    %359 = vector.broadcast %cst_126 : f32 to vector<8x128xf32>
    %360 = arith.mulf %359, %358 : vector<8x128xf32>
    %361 = arith.mulf %343, %317 : vector<8x128xf32>
    %cst_127 = arith.constant dense<0.000000e+00> : vector<8x128xf32>
    %362 = tpu.matmul %361, %5, %cst_127 {dimension_numbers = #tpu.dot_dimension_numbers<[1], [0], [0], [1], [0, 0, 1, 1], [], []>} : vector<8x128xf32>, vector<128x128xf32>, vector<8x128xf32> -> vector<8x128xf32>
    %363 = vector.broadcast %6 : vector<1x128xf32> to vector<8x128xf32>
    %364 = arith.addf %362, %363 : vector<8x128xf32>
    %365 = vector.extract_strided_slice %319 {offsets = [0, 256], sizes = [8, 128], strides = [1, 1]} : vector<8x384xf32> to vector<8x128xf32>
    %366 = vector.extract_strided_slice %321 {offsets = [0, 256], sizes = [8, 128], strides = [1, 1]} : vector<8x384xf32> to vector<8x128xf32>
    %367 = arith.addf %365, %366 : vector<8x128xf32>
    %368 = arith.addf %367, %364 : vector<8x128xf32>
    %369 = math.tanh %368 : vector<8x128xf32>
    %cst_128 = arith.constant 1.000000e+00 : f32
    %370 = vector.broadcast %cst_128 : f32 to vector<8x128xf32>
    %371 = arith.subf %370, %360 : vector<8x128xf32>
    %372 = arith.mulf %371, %369 : vector<8x128xf32>
    %373 = arith.mulf %360, %317 : vector<8x128xf32>
    %374 = arith.addf %372, %373 : vector<8x128xf32>
    %c0_129 = arith.constant 0 : index
    %c0_130 = arith.constant 0 : index
    %375 = vector.load %arg8[%c0_129, %c0_130] : memref<8x128xf32, #tpu.memory_space<vmem>>, vector<8x128xf32>
    tpu.vector_store %arg8[%c0_129, %c0_130], %374 {strides = array<i32>} : memref<8x128xf32, #tpu.memory_space<vmem>>, vector<8x128xf32>,
    %c5_131 = arith.constant 5 : index
    %c0_132 = arith.constant 0 : index
    %c0_133 = arith.constant 0 : index
    %376 = vector.load %arg7[%c5_131, %c0_132, %c0_133] : memref<8x8x128xf32, #tpu.memory_space<vmem>>, vector<1x8x128xf32>
    %377 = vector.shape_cast %376 : vector<1x8x128xf32> to vector<8x128xf32>
    %378 = vector.shape_cast %374 : vector<8x128xf32> to vector<1x8x128xf32>
    tpu.vector_store %arg7[%c5_131, %c0_132, %c0_133], %378 {strides = array<i32>} : memref<8x8x128xf32, #tpu.memory_space<vmem>>, vector<1x8x128xf32>,
    %c0_134 = arith.constant 0 : index
    %c0_135 = arith.constant 0 : index
    %379 = vector.load %arg8[%c0_134, %c0_135] : memref<8x128xf32, #tpu.memory_space<vmem>>, vector<8x128xf32>
    %c6 = arith.constant 6 : index
    %c0_136 = arith.constant 0 : index
    %c0_137 = arith.constant 0 : index
    %380 = vector.load %arg1[%c6, %c0_136, %c0_137] : memref<8x8x384xf32, #tpu.memory_space<vmem>>, vector<1x8x384xf32>
    %381 = vector.shape_cast %380 : vector<1x8x384xf32> to vector<8x384xf32>
    %c6_138 = arith.constant 6 : index
    %c0_139 = arith.constant 0 : index
    %c0_140 = arith.constant 0 : index
    %382 = vector.load %arg2[%c6_138, %c0_139, %c0_140] : memref<8x8x384xf32, #tpu.memory_space<vmem>>, vector<1x8x384xf32>
    %383 = vector.shape_cast %382 : vector<1x8x384xf32> to vector<8x384xf32>
    %cst_141 = arith.constant dense<0.000000e+00> : vector<8x256xf32>
    %384 = tpu.matmul %379, %3, %cst_141 {dimension_numbers = #tpu.dot_dimension_numbers<[1], [0], [0], [1], [0, 0, 1, 1], [], []>} : vector<8x128xf32>, vector<128x256xf32>, vector<8x256xf32> -> vector<8x256xf32>
    %385 = vector.broadcast %4 : vector<1x256xf32> to vector<8x256xf32>
    %386 = arith.addf %384, %385 : vector<8x256xf32>
    %387 = vector.extract_strided_slice %386 {offsets = [0, 0], sizes = [8, 128], strides = [1, 1]} : vector<8x256xf32> to vector<8x128xf32>
    %388 = vector.extract_strided_slice %386 {offsets = [0, 128], sizes = [8, 128], strides = [1, 1]} : vector<8x256xf32> to vector<8x128xf32>
    %389 = vector.extract_strided_slice %381 {offsets = [0, 0], sizes = [8, 128], strides = [1, 1]} : vector<8x384xf32> to vector<8x128xf32>
    %390 = arith.addf %389, %387 : vector<8x128xf32>
    %391 = arith.negf %390 : vector<8x128xf32>
    %392 = math.exp %391 : vector<8x128xf32>
    %cst_142 = arith.constant 1.000000e+00 : f32
    %393 = vector.broadcast %cst_142 : f32 to vector<8x128xf32>
    %394 = arith.addf %393, %392 : vector<8x128xf32>
    %395 = arith.divf %393, %394 : vector<8x128xf32>
    %396 = vector.extract_strided_slice %383 {offsets = [0, 0], sizes = [8, 128], strides = [1, 1]} : vector<8x384xf32> to vector<8x128xf32>
    %397 = arith.addf %396, %387 : vector<8x128xf32>
    %398 = arith.negf %397 : vector<8x128xf32>
    %399 = math.exp %398 : vector<8x128xf32>
    %cst_143 = arith.constant 1.000000e+00 : f32
    %400 = vector.broadcast %cst_143 : f32 to vector<8x128xf32>
    %401 = arith.addf %400, %399 : vector<8x128xf32>
    %402 = arith.divf %400, %401 : vector<8x128xf32>
    %403 = arith.addf %395, %402 : vector<8x128xf32>
    %cst_144 = arith.constant 5.000000e-01 : f32
    %404 = vector.broadcast %cst_144 : f32 to vector<8x128xf32>
    %405 = arith.mulf %404, %403 : vector<8x128xf32>
    %406 = vector.extract_strided_slice %381 {offsets = [0, 128], sizes = [8, 128], strides = [1, 1]} : vector<8x384xf32> to vector<8x128xf32>
    %407 = arith.addf %406, %388 : vector<8x128xf32>
    %408 = arith.negf %407 : vector<8x128xf32>
    %409 = math.exp %408 : vector<8x128xf32>
    %cst_145 = arith.constant 1.000000e+00 : f32
    %410 = vector.broadcast %cst_145 : f32 to vector<8x128xf32>
    %411 = arith.addf %410, %409 : vector<8x128xf32>
    %412 = arith.divf %410, %411 : vector<8x128xf32>
    %413 = vector.extract_strided_slice %383 {offsets = [0, 128], sizes = [8, 128], strides = [1, 1]} : vector<8x384xf32> to vector<8x128xf32>
    %414 = arith.addf %413, %388 : vector<8x128xf32>
    %415 = arith.negf %414 : vector<8x128xf32>
    %416 = math.exp %415 : vector<8x128xf32>
    %cst_146 = arith.constant 1.000000e+00 : f32
    %417 = vector.broadcast %cst_146 : f32 to vector<8x128xf32>
    %418 = arith.addf %417, %416 : vector<8x128xf32>
    %419 = arith.divf %417, %418 : vector<8x128xf32>
    %420 = arith.addf %412, %419 : vector<8x128xf32>
    %cst_147 = arith.constant 5.000000e-01 : f32
    %421 = vector.broadcast %cst_147 : f32 to vector<8x128xf32>
    %422 = arith.mulf %421, %420 : vector<8x128xf32>
    %423 = arith.mulf %405, %379 : vector<8x128xf32>
    %cst_148 = arith.constant dense<0.000000e+00> : vector<8x128xf32>
    %424 = tpu.matmul %423, %5, %cst_148 {dimension_numbers = #tpu.dot_dimension_numbers<[1], [0], [0], [1], [0, 0, 1, 1], [], []>} : vector<8x128xf32>, vector<128x128xf32>, vector<8x128xf32> -> vector<8x128xf32>
    %425 = vector.broadcast %6 : vector<1x128xf32> to vector<8x128xf32>
    %426 = arith.addf %424, %425 : vector<8x128xf32>
    %427 = vector.extract_strided_slice %381 {offsets = [0, 256], sizes = [8, 128], strides = [1, 1]} : vector<8x384xf32> to vector<8x128xf32>
    %428 = vector.extract_strided_slice %383 {offsets = [0, 256], sizes = [8, 128], strides = [1, 1]} : vector<8x384xf32> to vector<8x128xf32>
    %429 = arith.addf %427, %428 : vector<8x128xf32>
    %430 = arith.addf %429, %426 : vector<8x128xf32>
    %431 = math.tanh %430 : vector<8x128xf32>
    %cst_149 = arith.constant 1.000000e+00 : f32
    %432 = vector.broadcast %cst_149 : f32 to vector<8x128xf32>
    %433 = arith.subf %432, %422 : vector<8x128xf32>
    %434 = arith.mulf %433, %431 : vector<8x128xf32>
    %435 = arith.mulf %422, %379 : vector<8x128xf32>
    %436 = arith.addf %434, %435 : vector<8x128xf32>
    %c0_150 = arith.constant 0 : index
    %c0_151 = arith.constant 0 : index
    %437 = vector.load %arg8[%c0_150, %c0_151] : memref<8x128xf32, #tpu.memory_space<vmem>>, vector<8x128xf32>
    tpu.vector_store %arg8[%c0_150, %c0_151], %436 {strides = array<i32>} : memref<8x128xf32, #tpu.memory_space<vmem>>, vector<8x128xf32>,
    %c6_152 = arith.constant 6 : index
    %c0_153 = arith.constant 0 : index
    %c0_154 = arith.constant 0 : index
    %438 = vector.load %arg7[%c6_152, %c0_153, %c0_154] : memref<8x8x128xf32, #tpu.memory_space<vmem>>, vector<1x8x128xf32>
    %439 = vector.shape_cast %438 : vector<1x8x128xf32> to vector<8x128xf32>
    %440 = vector.shape_cast %436 : vector<8x128xf32> to vector<1x8x128xf32>
    tpu.vector_store %arg7[%c6_152, %c0_153, %c0_154], %440 {strides = array<i32>} : memref<8x8x128xf32, #tpu.memory_space<vmem>>, vector<1x8x128xf32>,
    %c0_155 = arith.constant 0 : index
    %c0_156 = arith.constant 0 : index
    %441 = vector.load %arg8[%c0_155, %c0_156] : memref<8x128xf32, #tpu.memory_space<vmem>>, vector<8x128xf32>
    %c7 = arith.constant 7 : index
    %c0_157 = arith.constant 0 : index
    %c0_158 = arith.constant 0 : index
    %442 = vector.load %arg1[%c7, %c0_157, %c0_158] : memref<8x8x384xf32, #tpu.memory_space<vmem>>, vector<1x8x384xf32>
    %443 = vector.shape_cast %442 : vector<1x8x384xf32> to vector<8x384xf32>
    %c7_159 = arith.constant 7 : index
    %c0_160 = arith.constant 0 : index
    %c0_161 = arith.constant 0 : index
    %444 = vector.load %arg2[%c7_159, %c0_160, %c0_161] : memref<8x8x384xf32, #tpu.memory_space<vmem>>, vector<1x8x384xf32>
    %445 = vector.shape_cast %444 : vector<1x8x384xf32> to vector<8x384xf32>
    %cst_162 = arith.constant dense<0.000000e+00> : vector<8x256xf32>
    %446 = tpu.matmul %441, %3, %cst_162 {dimension_numbers = #tpu.dot_dimension_numbers<[1], [0], [0], [1], [0, 0, 1, 1], [], []>} : vector<8x128xf32>, vector<128x256xf32>, vector<8x256xf32> -> vector<8x256xf32>
    %447 = vector.broadcast %4 : vector<1x256xf32> to vector<8x256xf32>
    %448 = arith.addf %446, %447 : vector<8x256xf32>
    %449 = vector.extract_strided_slice %448 {offsets = [0, 0], sizes = [8, 128], strides = [1, 1]} : vector<8x256xf32> to vector<8x128xf32>
    %450 = vector.extract_strided_slice %448 {offsets = [0, 128], sizes = [8, 128], strides = [1, 1]} : vector<8x256xf32> to vector<8x128xf32>
    %451 = vector.extract_strided_slice %443 {offsets = [0, 0], sizes = [8, 128], strides = [1, 1]} : vector<8x384xf32> to vector<8x128xf32>
    %452 = arith.addf %451, %449 : vector<8x128xf32>
    %453 = arith.negf %452 : vector<8x128xf32>
    %454 = math.exp %453 : vector<8x128xf32>
    %cst_163 = arith.constant 1.000000e+00 : f32
    %455 = vector.broadcast %cst_163 : f32 to vector<8x128xf32>
    %456 = arith.addf %455, %454 : vector<8x128xf32>
    %457 = arith.divf %455, %456 : vector<8x128xf32>
    %458 = vector.extract_strided_slice %445 {offsets = [0, 0], sizes = [8, 128], strides = [1, 1]} : vector<8x384xf32> to vector<8x128xf32>
    %459 = arith.addf %458, %449 : vector<8x128xf32>
    %460 = arith.negf %459 : vector<8x128xf32>
    %461 = math.exp %460 : vector<8x128xf32>
    %cst_164 = arith.constant 1.000000e+00 : f32
    %462 = vector.broadcast %cst_164 : f32 to vector<8x128xf32>
    %463 = arith.addf %462, %461 : vector<8x128xf32>
    %464 = arith.divf %462, %463 : vector<8x128xf32>
    %465 = arith.addf %457, %464 : vector<8x128xf32>
    %cst_165 = arith.constant 5.000000e-01 : f32
    %466 = vector.broadcast %cst_165 : f32 to vector<8x128xf32>
    %467 = arith.mulf %466, %465 : vector<8x128xf32>
    %468 = vector.extract_strided_slice %443 {offsets = [0, 128], sizes = [8, 128], strides = [1, 1]} : vector<8x384xf32> to vector<8x128xf32>
    %469 = arith.addf %468, %450 : vector<8x128xf32>
    %470 = arith.negf %469 : vector<8x128xf32>
    %471 = math.exp %470 : vector<8x128xf32>
    %cst_166 = arith.constant 1.000000e+00 : f32
    %472 = vector.broadcast %cst_166 : f32 to vector<8x128xf32>
    %473 = arith.addf %472, %471 : vector<8x128xf32>
    %474 = arith.divf %472, %473 : vector<8x128xf32>
    %475 = vector.extract_strided_slice %445 {offsets = [0, 128], sizes = [8, 128], strides = [1, 1]} : vector<8x384xf32> to vector<8x128xf32>
    %476 = arith.addf %475, %450 : vector<8x128xf32>
    %477 = arith.negf %476 : vector<8x128xf32>
    %478 = math.exp %477 : vector<8x128xf32>
    %cst_167 = arith.constant 1.000000e+00 : f32
    %479 = vector.broadcast %cst_167 : f32 to vector<8x128xf32>
    %480 = arith.addf %479, %478 : vector<8x128xf32>
    %481 = arith.divf %479, %480 : vector<8x128xf32>
    %482 = arith.addf %474, %481 : vector<8x128xf32>
    %cst_168 = arith.constant 5.000000e-01 : f32
    %483 = vector.broadcast %cst_168 : f32 to vector<8x128xf32>
    %484 = arith.mulf %483, %482 : vector<8x128xf32>
    %485 = arith.mulf %467, %441 : vector<8x128xf32>
    %cst_169 = arith.constant dense<0.000000e+00> : vector<8x128xf32>
    %486 = tpu.matmul %485, %5, %cst_169 {dimension_numbers = #tpu.dot_dimension_numbers<[1], [0], [0], [1], [0, 0, 1, 1], [], []>} : vector<8x128xf32>, vector<128x128xf32>, vector<8x128xf32> -> vector<8x128xf32>
    %487 = vector.broadcast %6 : vector<1x128xf32> to vector<8x128xf32>
    %488 = arith.addf %486, %487 : vector<8x128xf32>
    %489 = vector.extract_strided_slice %443 {offsets = [0, 256], sizes = [8, 128], strides = [1, 1]} : vector<8x384xf32> to vector<8x128xf32>
    %490 = vector.extract_strided_slice %445 {offsets = [0, 256], sizes = [8, 128], strides = [1, 1]} : vector<8x384xf32> to vector<8x128xf32>
    %491 = arith.addf %489, %490 : vector<8x128xf32>
    %492 = arith.addf %491, %488 : vector<8x128xf32>
    %493 = math.tanh %492 : vector<8x128xf32>
    %cst_170 = arith.constant 1.000000e+00 : f32
    %494 = vector.broadcast %cst_170 : f32 to vector<8x128xf32>
    %495 = arith.subf %494, %484 : vector<8x128xf32>
    %496 = arith.mulf %495, %493 : vector<8x128xf32>
    %497 = arith.mulf %484, %441 : vector<8x128xf32>
    %498 = arith.addf %496, %497 : vector<8x128xf32>
    %c0_171 = arith.constant 0 : index
    %c0_172 = arith.constant 0 : index
    %499 = vector.load %arg8[%c0_171, %c0_172] : memref<8x128xf32, #tpu.memory_space<vmem>>, vector<8x128xf32>
    tpu.vector_store %arg8[%c0_171, %c0_172], %498 {strides = array<i32>} : memref<8x128xf32, #tpu.memory_space<vmem>>, vector<8x128xf32>,
    %c7_173 = arith.constant 7 : index
    %c0_174 = arith.constant 0 : index
    %c0_175 = arith.constant 0 : index
    %500 = vector.load %arg7[%c7_173, %c0_174, %c0_175] : memref<8x8x128xf32, #tpu.memory_space<vmem>>, vector<1x8x128xf32>
    %501 = vector.shape_cast %500 : vector<1x8x128xf32> to vector<8x128xf32>
    %502 = vector.shape_cast %498 : vector<8x128xf32> to vector<1x8x128xf32>
    tpu.vector_store %arg7[%c7_173, %c0_174, %c0_175], %502 {strides = array<i32>} : memref<8x8x128xf32, #tpu.memory_space<vmem>>, vector<1x8x128xf32>,
    return
  }
  func.func @transform_0(%arg0: i32) -> (i32, i32, i32) {
    %c0_i32 = arith.constant 0 : i32
    %c0_i32_0 = arith.constant 0 : i32
    %c0_i32_1 = arith.constant 0 : i32
    return %arg0, %c0_i32, %c0_i32_0 : i32, i32, i32
  }
  func.func @transform_1(%arg0: i32) -> (i32, i32, i32) {
    %c0_i32 = arith.constant 0 : i32
    %c0_i32_0 = arith.constant 0 : i32
    %c0_i32_1 = arith.constant 0 : i32
    return %arg0, %c0_i32, %c0_i32_0 : i32, i32, i32
  }
  func.func @transform_2(%arg0: i32) -> (i32, i32) {
    %c0_i32 = arith.constant 0 : i32
    %c0_i32_0 = arith.constant 0 : i32
    %c0_i32_1 = arith.constant 0 : i32
    return %c0_i32, %c0_i32_0 : i32, i32
  }
  func.func @transform_3(%arg0: i32) -> (i32, i32) {
    %c0_i32 = arith.constant 0 : i32
    %c0_i32_0 = arith.constant 0 : i32
    %c0_i32_1 = arith.constant 0 : i32
    return %c0_i32, %c0_i32_0 : i32, i32
  }
  func.func @transform_4(%arg0: i32) -> (i32, i32) {
    %c0_i32 = arith.constant 0 : i32
    %c0_i32_0 = arith.constant 0 : i32
    %c0_i32_1 = arith.constant 0 : i32
    return %c0_i32, %c0_i32_0 : i32, i32
  }
  func.func @transform_5(%arg0: i32) -> (i32, i32) {
    %c0_i32 = arith.constant 0 : i32
    %c0_i32_0 = arith.constant 0 : i32
    %c0_i32_1 = arith.constant 0 : i32
    return %c0_i32, %c0_i32_0 : i32, i32
  }
  func.func @transform_6(%arg0: i32) -> (i32, i32, i32) {
    %c0_i32 = arith.constant 0 : i32
    %c0_i32_0 = arith.constant 0 : i32
    %c0_i32_1 = arith.constant 0 : i32
    return %arg0, %c0_i32, %c0_i32_0 : i32, i32, i32
  }
}

</mosaic_0001>

<llo_original>
// kernel: dual_input_gru.1
$region0: #{dual_input_gru.1}
  #allocation0 [shape = 'u32[]', space=smem, size = 0x4, offset = 0x4, fixed_abs, tag = 'smem constant byte address 0x4 - core index']
  #allocation1 [shape = 'u32[144,128]{1,0:T(1,128)}', space=vmem, size = 0x12000, scoped, tag = 'internal scratch']
  #allocation2 [shape = 'f32[8,128]{1,0:T(8,128)}', space=vmem, size = 0x1000, scoped, tag = 'scratch operand']
  %s0 = inlined_call_operand.vmem [shape: f32[16,8,384], index: 0, kind: input, shape index: {}]
  %s1 = inlined_call_operand.vmem [shape: f32[16,8,384], index: 1, kind: input, shape index: {}]
  %s2 = inlined_call_operand.vmem [shape: f32[128,256], index: 2, kind: input, shape index: {}]
  %s3 = inlined_call_operand.vmem [shape: f32[1,256], index: 3, kind: input, shape index: {}]
  %s4 = inlined_call_operand.vmem [shape: f32[128,128], index: 4, kind: input, shape index: {}]
  %s5 = inlined_call_operand.vmem [shape: f32[1,128], index: 5, kind: input, shape index: {}]
  %s6 = inlined_call_operand.vmem [shape: f32[16,8,128], index: 6, kind: output, shape index: {}]
  %s7 = sld [smem:[#allocation0]]
  $region61: #{dual_input_gru.1} parent=0
    _
  %s9 = ssub.s32 1, %s7
  %s10 = scalar_select 0, %s9, %s7
  loop: start=0, step=1, limit=4
  $region2: #{dual_input_gru.1} parent=0 // loop_pre_header
    _
  $region3: #{dual_input_gru.1} parent=0 // loop_header
    %s12 = sphi 0, %s16
    %p13 = scmp.ge.s32.totalorder %s12, 4
    %s22 = sphi 0, %s24
    %s25 = sphi 0, %s22
    %s26 = sphi 0, %s25
    %s42 = sphi 0, %s26
    %s48 = sphi 0, %s50
    %s51 = sphi 0, %s48
    %s52 = sphi 0, %s51
    %s68 = sphi 0, %s52
    %s72 = sphi 0, %s72
    %s74 = sphi 0, %s72
    %s75 = sphi 0, %s74
    %s89 = sphi 0, %s75
    %s93 = sphi 0, %s93
    %s95 = sphi 0, %s93
    %s96 = sphi 0, %s95
    %s110 = sphi 0, %s96
    %s114 = sphi 0, %s114
    %s116 = sphi 0, %s114
    %s117 = sphi 0, %s116
    %s131 = sphi 0, %s117
    %s135 = sphi 0, %s135
    %s137 = sphi 0, %s135
    %s138 = sphi 0, %s137
    %s152 = sphi 0, %s138
    %s158 = sphi 0, %s160
    %s161 = sphi 0, %s158
    %s162 = sphi 0, %s161
    %s178 = sphi 0, %s162
  $region4: #{dual_input_gru.1} parent=0 // loop_header_branch
    %15 = sbr.rel (%p13) target = $region8
  $region5: #{dual_input_gru.1} parent=0 // loop_body
    %s17 = ssub.s32 %s12, 1
    %s18 = ssub.s32 %s12, 2
    %s19 = sadd.s32 %s12, 1
    %s20 = ssub.s32 %s12, %s19
    %p21 = scmp.eq.s32.totalorder %s20, 0
    %s23 = sadd.s32 %s22, 1
    %s24 = scalar_select %p21, %s22, %s23
    %p27 = pneg %p21
    %p28 = scmp.eq.s32.totalorder %s12, 1
    %p29 = por %p27, %p28
    %p30 = scmp.ne.s32.totalorder %s22, %s25
    %p31 = scmp.eq.s32.totalorder %s12, 0
    %p32 = por %p30, %p31
    %p33 = scmp.ne.s32.totalorder %s22, %s25
    %p34 = scmp.eq.s32.totalorder %s17, 1
    %p35 = por %p33, %p34
    %p36 = scmp.ne.s32.totalorder %s25, %s26
    %p37 = scmp.eq.s32.totalorder %s17, 0
    %p38 = por %p36, %p37
    %p39 = scmp.ne.s32.totalorder %s25, %s26
    %p40 = scmp.eq.s32.totalorder %s18, 1
    %p41 = por %p39, %p40
    %p43 = scmp.ne.s32.totalorder %s26, %s42
    %p44 = scmp.eq.s32.totalorder %s18, 0
    %p45 = por %p43, %p44
    %s46 = ssub.s32 %s12, %s19
    %p47 = scmp.eq.s32.totalorder %s46, 0
    %s49 = sadd.s32 %s48, 1
    %s50 = scalar_select %p47, %s48, %s49
    %p53 = pneg %p47
    %p54 = scmp.eq.s32.totalorder %s12, 1
    %p55 = por %p53, %p54
    %p56 = scmp.ne.s32.totalorder %s48, %s51
    %p57 = scmp.eq.s32.totalorder %s12, 0
    %p58 = por %p56, %p57
    %p59 = scmp.ne.s32.totalorder %s48, %s51
    %p60 = scmp.eq.s32.totalorder %s17, 1
    %p61 = por %p59, %p60
    %p62 = scmp.ne.s32.totalorder %s51, %s52
    %p63 = scmp.eq.s32.totalorder %s17, 0
    %p64 = por %p62, %p63
    %p65 = scmp.ne.s32.totalorder %s51, %s52
    %p66 = scmp.eq.s32.totalorder %s18, 1
    %p67 = por %p65, %p66
    %p69 = scmp.ne.s32.totalorder %s52, %s68
    %p70 = scmp.eq.s32.totalorder %s18, 0
    %p71 = por %p69, %p70
    %s73 = sadd.s32 %s72, 1
    %p76 = scmp.eq.s32.totalorder %s12, 1
    %p77 = scmp.ne.s32.totalorder %s72, %s74
    %p78 = scmp.eq.s32.totalorder %s12, 0
    %p79 = por %p77, %p78
    %p80 = scmp.ne.s32.totalorder %s72, %s74
    %p81 = scmp.eq.s32.totalorder %s17, 1
    %p82 = por %p80, %p81
    %p83 = scmp.ne.s32.totalorder %s74, %s75
    %p84 = scmp.eq.s32.totalorder %s17, 0
    %p85 = por %p83, %p84
    %p86 = scmp.ne.s32.totalorder %s74, %s75
    %p87 = scmp.eq.s32.totalorder %s18, 1
    %p88 = por %p86, %p87
    %p90 = scmp.ne.s32.totalorder %s75, %s89
    %p91 = scmp.eq.s32.totalorder %s18, 0
    %p92 = por %p90, %p91
    %s94 = sadd.s32 %s93, 1
    %p97 = scmp.eq.s32.totalorder %s12, 1
    %p98 = scmp.ne.s32.totalorder %s93, %s95
    %p99 = scmp.eq.s32.totalorder %s12, 0
    %p100 = por %p98, %p99
    %p101 = scmp.ne.s32.totalorder %s93, %s95
    %p102 = scmp.eq.s32.totalorder %s17, 1
    %p103 = por %p101, %p102
    %p104 = scmp.ne.s32.totalorder %s95, %s96
    %p105 = scmp.eq.s32.totalorder %s17, 0
    %p106 = por %p104, %p105
    %p107 = scmp.ne.s32.totalorder %s95, %s96
    %p108 = scmp.eq.s32.totalorder %s18, 1
    %p109 = por %p107, %p108
    %p111 = scmp.ne.s32.totalorder %s96, %s110
    %p112 = scmp.eq.s32.totalorder %s18, 0
    %p113 = por %p111, %p112
    %s115 = sadd.s32 %s114, 1
    %p118 = scmp.eq.s32.totalorder %s12, 1
    %p119 = scmp.ne.s32.totalorder %s114, %s116
    %p120 = scmp.eq.s32.totalorder %s12, 0
    %p121 = por %p119, %p120
    %p122 = scmp.ne.s32.totalorder %s114, %s116
    %p123 = scmp.eq.s32.totalorder %s17, 1
    %p124 = por %p122, %p123
    %p125 = scmp.ne.s32.totalorder %s116, %s117
    %p126 = scmp.eq.s32.totalorder %s17, 0
    %p127 = por %p125, %p126
    %p128 = scmp.ne.s32.totalorder %s116, %s117
    %p129 = scmp.eq.s32.totalorder %s18, 1
    %p130 = por %p128, %p129
    %p132 = scmp.ne.s32.totalorder %s117, %s131
    %p133 = scmp.eq.s32.totalorder %s18, 0
    %p134 = por %p132, %p133
    %s136 = sadd.s32 %s135, 1
    %p139 = scmp.eq.s32.totalorder %s12, 1
    %p140 = scmp.ne.s32.totalorder %s135, %s137
    %p141 = scmp.eq.s32.totalorder %s12, 0
    %p142 = por %p140, %p141
    %p143 = scmp.ne.s32.totalorder %s135, %s137
    %p144 = scmp.eq.s32.totalorder %s17, 1
    %p145 = por %p143, %p144
    %p146 = scmp.ne.s32.totalorder %s137, %s138
    %p147 = scmp.eq.s32.totalorder %s17, 0
    %p148 = por %p146, %p147
    %p149 = scmp.ne.s32.totalorder %s137, %s138
    %p150 = scmp.eq.s32.totalorder %s18, 1
    %p151 = por %p149, %p150
    %p153 = scmp.ne.s32.totalorder %s138, %s152
    %p154 = scmp.eq.s32.totalorder %s18, 0
    %p155 = por %p153, %p154
    %s156 = ssub.s32 %s12, %s19
    %p157 = scmp.eq.s32.totalorder %s156, 0
    %s159 = sadd.s32 %s158, 1
    %s160 = scalar_select %p157, %s158, %s159
    %p163 = pneg %p157
    %p164 = scmp.eq.s32.totalorder %s12, 1
    %p165 = por %p163, %p164
    %p166 = scmp.ne.s32.totalorder %s158, %s161
    %p167 = scmp.eq.s32.totalorder %s12, 0
    %p168 = por %p166, %p167
    %p169 = scmp.ne.s32.totalorder %s158, %s161
    %p170 = scmp.eq.s32.totalorder %s17, 1
    %p171 = por %p169, %p170
    %p172 = scmp.ne.s32.totalorder %s161, %s162
    %p173 = scmp.eq.s32.totalorder %s17, 0
    %p174 = por %p172, %p173
    %p175 = scmp.ne.s32.totalorder %s161, %s162
    %p176 = scmp.eq.s32.totalorder %s18, 1
    %p177 = por %p175, %p176
    %p179 = scmp.ne.s32.totalorder %s162, %s178
    %p180 = scmp.eq.s32.totalorder %s18, 0
    %p181 = por %p179, %p180
    %p182 = scmp.le.s32.totalorder 1, %s12
    %p183 = scmp.lt.s32.totalorder %s12, 3
    %p184 = pnand %p182, %p183
    %p185 = pneg %p184
    // Predicated region
    $region9: #{dual_input_gru.1} parent=5 // pred_check
      _
    $region10: #{dual_input_gru.1} parent=5 // pred_check_branch
      %187 = sbr.rel (%p184) target = $region12
    $region11: #{dual_input_gru.1} parent=5 // pred_region
      %s188 = ssub.s32 %s12, 1
      // Predicated region
      $region13: #{dual_input_gru.1} parent=11 // pred_check
        %p189 = pneg %p85
      $region14: #{dual_input_gru.1} parent=11 // pred_check_branch
        %191 = sbr.rel (%p189) target = $region16
      $region15: #{dual_input_gru.1} parent=11 // pred_region
        _
      $region16: #{dual_input_gru.1} parent=11 // pred_fallthru
        _
      // Predicated region
      $region17: #{dual_input_gru.1} parent=11 // pred_check
        %p192 = pneg %p106
      $region18: #{dual_input_gru.1} parent=11 // pred_check_branch
        %194 = sbr.rel (%p192) target = $region20
      $region19: #{dual_input_gru.1} parent=11 // pred_region
        _
      $region20: #{dual_input_gru.1} parent=11 // pred_fallthru
        _
      // Predicated region
      $region21: #{dual_input_gru.1} parent=11 // pred_check
        %p195 = pneg %p127
      $region22: #{dual_input_gru.1} parent=11 // pred_check_branch
        %197 = sbr.rel (%p195) target = $region24
      $region23: #{dual_input_gru.1} parent=11 // pred_region
        _
      $region24: #{dual_input_gru.1} parent=11 // pred_fallthru
        _
      // Predicated region
      $region25: #{dual_input_gru.1} parent=11 // pred_check
        %p198 = pneg %p148
      $region26: #{dual_input_gru.1} parent=11 // pred_check_branch
        %200 = sbr.rel (%p198) target = $region28
      $region27: #{dual_input_gru.1} parent=11 // pred_region
        _
      $region28: #{dual_input_gru.1} parent=11 // pred_fallthru
        _
    $region12: #{dual_input_gru.1} parent=5 // pred_fallthru
      _
    %p201 = scmp.lt.s32.totalorder %s12, 2
    // Predicated region
    $region29: #{dual_input_gru.1} parent=5 // pred_check
      %p202 = pneg %p201
    $region30: #{dual_input_gru.1} parent=5 // pred_check_branch
      %204 = sbr.rel (%p202) target = $region32
    $region31: #{dual_input_gru.1} parent=5 // pred_region
      // Predicated region
      $region33: #{dual_input_gru.1} parent=31 // pred_check
        %p205 = pneg %p32
      $region34: #{dual_input_gru.1} parent=31 // pred_check_branch
        %207 = sbr.rel (%p205) target = $region36
      $region35: #{dual_input_gru.1} parent=31 // pred_region
        %s208 = smul.u32 8, %s12
        %p209 = scmp.lt.s32.totalorder %s208, 15
        %s210 = scalar_select %p209, %s208, 15
        %s211 = smul.addr %s210, 3
        %s212 = smul.addr %s211, 8
        %s213 = scalar_lea.vmem %s0, %s212
        %s214 = smul.u32 8, %s12
      $region36: #{dual_input_gru.1} parent=31 // pred_fallthru
        _
      // Predicated region
      $region37: #{dual_input_gru.1} parent=31 // pred_check
        %p215 = pneg %p58
      $region38: #{dual_input_gru.1} parent=31 // pred_check_branch
        %217 = sbr.rel (%p215) target = $region40
      $region39: #{dual_input_gru.1} parent=31 // pred_region
        %s218 = smul.u32 8, %s12
        %p219 = scmp.lt.s32.totalorder %s218, 15
        %s220 = scalar_select %p219, %s218, 15
        %s221 = smul.addr %s220, 3
        %s222 = smul.addr %s221, 8
        %s223 = scalar_lea.vmem %s1, %s222
        %s224 = smul.u32 8, %s12
      $region40: #{dual_input_gru.1} parent=31 // pred_fallthru
        _
    $region32: #{dual_input_gru.1} parent=5 // pred_fallthru
      _
    %p225 = scmp.le.s32.totalorder 1, %s12
    %p226 = scmp.lt.s32.totalorder %s12, 3
    %p227 = pnand %p225, %p226
    %p228 = pneg %p227
    // Predicated region
    $region41: #{dual_input_gru.1} parent=5 // pred_check
      _
    $region42: #{dual_input_gru.1} parent=5 // pred_check_branch
      %230 = sbr.rel (%p227) target = $region44
    $region43: #{dual_input_gru.1} parent=5 // pred_region
      %s231 = ssub.s32 %s12, 1
      %s232 = smul.u32 8, %s17
      %p233 = scmp.lt.s32.totalorder %s232, 15
      %s234 = scalar_select %p233, %s232, 15
      %s235 = smul.addr %s234, 3
      %s236 = smul.addr %s235, 8
      %s237 = scalar_lea.vmem %s0, %s236
      %p238 = pneg %p38
      %p239 = pneg %p35
      %s240 = smul.u32 8, %s17
      %p241 = scmp.lt.s32.totalorder %s240, 15
      %s242 = scalar_select %p241, %s240, 15
      %s243 = smul.addr %s242, 3
      %s244 = smul.addr %s243, 8
      %s245 = scalar_lea.vmem %s1, %s244
      %p246 = pneg %p64
      %p247 = pneg %p61
      %p248 = pneg %p85
      %p249 = pneg %p82
      %p250 = pneg %p106
      %p251 = pneg %p103
      %p252 = pneg %p127
      %p253 = pneg %p124
      %p254 = pneg %p148
      %p255 = pneg %p145
      %p256 = pneg %p174
      %p257 = pneg %p171
      %s258 = smul.u32 8, %s17
      %p259 = scmp.lt.s32.totalorder %s258, 15
      %s260 = scalar_select %p259, %s258, 15
      %s261 = smul.addr %s260, 8
      %s262 = scalar_lea.vmem %s6, %s261
      %s263 = smul.u32 8, %s17
      %p264 = scmp.lt.s32.totalorder %s263, 15
      %s265 = scalar_select %p264, %s263, 15
      %s266 = smul.addr %s265, 3
      %s267 = smul.addr %s266, 8
      %s268 = scalar_lea.vmem %s0, %s267
      %s269 = smul.u32 8, %s17
      %s270 = smul.u32 8, %s17
      %p271 = scmp.lt.s32.totalorder %s270, 15
      %s272 = scalar_select %p271, %s270, 15
      %s273 = smul.addr %s272, 3
      %s274 = smul.addr %s273, 8
      %s275 = scalar_lea.vmem %s1, %s274
      %s276 = smul.u32 8, %s17
      %s277 = smul.u32 8, %s17
      %p278 = scmp.lt.s32.totalorder %s277, 15
      %s279 = scalar_select %p278, %s277, 15
      %s280 = smul.addr %s279, 8
      %s281 = scalar_lea.vmem %s6, %s280
      %s282 = smul.u32 8, %s17
      %p283 = scmp.eq.s32.totalorder %s17, 0
      // Predicated region
      $region45: #{dual_input_gru.1} parent=43 // pred_check
        %p284 = pneg %p283
      $region46: #{dual_input_gru.1} parent=43 // pred_check_branch
        %286 = sbr.rel (%p284) target = $region48
      $region47: #{dual_input_gru.1} parent=43 // pred_region
        %287 = vst [vmem:[#allocation2] sm:$0xff] 0.0
      $region48: #{dual_input_gru.1} parent=43 // pred_fallthru
        _
      %v288 = vld [vmem:[%s2] sm:$0xff]
      %v289 = vld [vmem:[%s2 + $0x8] sm:$0xff]
      %v290 = vld [vmem:[%s2 + $0x10] sm:$0xff]
      %v291 = vld [vmem:[%s2 + $0x18] sm:$0xff]
      %v292 = vld [vmem:[%s2 + $0x20] sm:$0xff]
      %v293 = vld [vmem:[%s2 + $0x28] sm:$0xff]
      %v294 = vld [vmem:[%s2 + $0x30] sm:$0xff]
      %v295 = vld [vmem:[%s2 + $0x38] sm:$0xff]
      %v296 = vld [vmem:[%s2 + $0x40] sm:$0xff]
      %v297 = vld [vmem:[%s2 + $0x48] sm:$0xff]
      %v298 = vld [vmem:[%s2 + $0x50] sm:$0xff]
      %v299 = vld [vmem:[%s2 + $0x58] sm:$0xff]
      %v300 = vld [vmem:[%s2 + $0x60] sm:$0xff]
      %v301 = vld [vmem:[%s2 + $0x68] sm:$0xff]
      %v302 = vld [vmem:[%s2 + $0x70] sm:$0xff]
      %v303 = vld [vmem:[%s2 + $0x78] sm:$0xff]
      %v304 = vld [vmem:[%s2 + $0x80] sm:$0xff]
      %v305 = vld [vmem:[%s2 + $0x88] sm:$0xff]
      %v306 = vld [vmem:[%s2 + $0x90] sm:$0xff]
      %v307 = vld [vmem:[%s2 + $0x98] sm:$0xff]
      %v308 = vld [vmem:[%s2 + $0xa0] sm:$0xff]
      %v309 = vld [vmem:[%s2 + $0xa8] sm:$0xff]
      %v310 = vld [vmem:[%s2 + $0xb0] sm:$0xff]
      %v311 = vld [vmem:[%s2 + $0xb8] sm:$0xff]
      %v312 = vld [vmem:[%s2 + $0xc0] sm:$0xff]
      %v313 = vld [vmem:[%s2 + $0xc8] sm:$0xff]
      %v314 = vld [vmem:[%s2 + $0xd0] sm:$0xff]
      %v315 = vld [vmem:[%s2 + $0xd8] sm:$0xff]
      %v316 = vld [vmem:[%s2 + $0xe0] sm:$0xff]
      %v317 = vld [vmem:[%s2 + $0xe8] sm:$0xff]
      %v318 = vld [vmem:[%s2 + $0xf0] sm:$0xff]
      %v319 = vld [vmem:[%s2 + $0xf8] sm:$0xff]
      %v320 = vld [vmem:[%s3] sm:$0x3]
      %v321 = vld [vmem:[%s4] sm:$0xff]
      %v322 = vld [vmem:[%s4 + $0x8] sm:$0xff]
      %v323 = vld [vmem:[%s4 + $0x10] sm:$0xff]
      %v324 = vld [vmem:[%s4 + $0x18] sm:$0xff]
      %v325 = vld [vmem:[%s4 + $0x20] sm:$0xff]
      %v326 = vld [vmem:[%s4 + $0x28] sm:$0xff]
      %v327 = vld [vmem:[%s4 + $0x30] sm:$0xff]
      %v328 = vld [vmem:[%s4 + $0x38] sm:$0xff]
      %v329 = vld [vmem:[%s4 + $0x40] sm:$0xff]
      %v330 = vld [vmem:[%s4 + $0x48] sm:$0xff]
      %v331 = vld [vmem:[%s4 + $0x50] sm:$0xff]
      %v332 = vld [vmem:[%s4 + $0x58] sm:$0xff]
      %v333 = vld [vmem:[%s4 + $0x60] sm:$0xff]
      %v334 = vld [vmem:[%s4 + $0x68] sm:$0xff]
      %v335 = vld [vmem:[%s4 + $0x70] sm:$0xff]
      %v336 = vld [vmem:[%s4 + $0x78] sm:$0xff]
      %v337 = vld [vmem:[%s5] sm:$0x1]
      %v338 = vld [vmem:[#allocation2] sm:$0xff]
      %v339 = vld [vmem:[%s268] sm:$0xff]
      %v340 = vld [vmem:[%s268 + $0x8] sm:$0xff]
      %v341 = vld [vmem:[%s268 + $0x10] sm:$0xff]
      %v342 = vld [vmem:[%s275] sm:$0xff]
      %v343 = vld [vmem:[%s275 + $0x8] sm:$0xff]
      %v344 = vld [vmem:[%s275 + $0x10] sm:$0xff]
      %v346 = vlaneseq
      %v347 = vshrl.u32 %v346, 7
      %v348 = vsub.s32 0, %v347
      %v349 = vrot.slane %v320, %v348
      %v350 = vlaneseq
      %v351 = vshrl.u32 %v350, 7
      %v352 = vsub.s32 1, %v351
      %v353 = vrot.slane %v320, %v352
      %356 = vmatprep.subr.mxu0 %v289
      %357 = vmatpush1.msra.mxu0 %v288
      %358 = vmatprep.subr.mxu0 %v291
      %359 = vmatpush1.msra.mxu0 %v290
      %360 = vmatprep.subr.mxu0 %v293
      %361 = vmatpush1.msra.mxu0 %v292
      %362 = vmatprep.subr.mxu0 %v295
      %363 = vmatpush1.msra.mxu0 %v294
      %364 = vmatprep.subr.mxu0 %v297
      %365 = vmatpush1.msra.mxu0 %v296
      %366 = vmatprep.subr.mxu0 %v299
      %367 = vmatpush1.msra.mxu0 %v298
      %368 = vmatprep.subr.mxu0 %v301
      %369 = vmatpush1.msra.mxu0 %v300
      %370 = vmatprep.subr.mxu0 %v303
      %371 = vmatpush1.msra.mxu0 %v302
      %372 = vmatprep.subr.mxu0 %v305
      %373 = vmatpush1.msra.mxu0 %v304
      %374 = vmatprep.subr.mxu0 %v307
      %375 = vmatpush1.msra.mxu0 %v306
      %376 = vmatprep.subr.mxu0 %v309
      %377 = vmatpush1.msra.mxu0 %v308
      %378 = vmatprep.subr.mxu0 %v311
      %379 = vmatpush1.msra.mxu0 %v310
      %380 = vmatprep.subr.mxu0 %v313
      %381 = vmatpush1.msra.mxu0 %v312
      %382 = vmatprep.subr.mxu0 %v315
      %383 = vmatpush1.msra.mxu0 %v314
      %384 = vmatprep.subr.mxu0 %v317
      %385 = vmatpush1.msra.mxu0 %v316
      %386 = vmatprep.subr.mxu0 %v319
      %387 = vmatpush1.msra.mxu0 %v318
      %388 = vmatprep.subr.mxu0 0.0
      %389 = vmatpush1.msra.mxu0 0.0
      %390 = vmatprep.subr.mxu0 0.0
      %391 = vmatpush1.msra.mxu0 0.0
      %392 = vmatprep.subr.mxu0 0.0
      %393 = vmatpush1.msra.mxu0 0.0
      %394 = vmatprep.subr.mxu0 0.0
      %395 = vmatpush1.msra.mxu0 0.0
      %396 = vmatprep.subr.mxu0 0.0
      %397 = vmatpush1.msra.mxu0 0.0
      %398 = vmatprep.subr.mxu0 0.0
      %399 = vmatpush1.msra.mxu0 0.0
      %400 = vmatprep.subr.mxu0 0.0
      %401 = vmatpush1.msra.mxu0 0.0
      %402 = vmatprep.subr.mxu0 0.0
      %403 = vmatpush1.msra.mxu0 0.0
      %404 = vmatprep.subr.mxu0 0.0
      %405 = vmatpush1.msra.mxu0 0.0
      %406 = vmatprep.subr.mxu0 0.0
      %407 = vmatpush1.msra.mxu0 0.0
      %408 = vmatprep.subr.mxu0 0.0
      %409 = vmatpush1.msra.mxu0 0.0
      %410 = vmatprep.subr.mxu0 0.0
      %411 = vmatpush1.msra.mxu0 0.0
      %412 = vmatprep.subr.mxu0 0.0
      %413 = vmatpush1.msra.mxu0 0.0
      %414 = vmatprep.subr.mxu0 0.0
      %415 = vmatpush1.msra.mxu0 0.0
      %416 = vmatprep.subr.mxu0 0.0
      %417 = vmatpush1.msra.mxu0 0.0
      %418 = vmatprep.subr.mxu0 0.0
      %419 = vmatpush1.msra.mxu0 0.0
      %420 = vmatprep.mubr.f32.mxu0 0.0
      %421 = vmatmul.mubr.f32.gmra.mrb[0].mxu0 %v338
      %v422 = vpop.f32.mrb[0].mxu0
      %v423 = vadd.f32 %v349, %v422
      %v424 = vpop.f32.mrb[0].mxu0
      %v425 = vadd.f32 %v353, %v424
      %426 = vdwg.mxu0
      %v427 = vadd.f32 %v339, %v423
      %v428 = vxor.u32 %v427, 2147483648
      %v429 = vmul.f32 %v428, 1.442695
      %v430 = vpow.pop %v429
      %v431 = vadd.f32 %v430, 1.0
      %v432 = vrcp.pop %v431
      %v433 = vmul.f32 1.0, %v432
      %v434 = vadd.f32 %v342, %v423
      %v435 = vxor.u32 %v434, 2147483648
      %v436 = vmul.f32 %v435, 1.442695
      %v437 = vpow.pop %v436
      %v438 = vadd.f32 %v437, 1.0
      %v439 = vrcp.pop %v438
      %v440 = vmul.f32 1.0, %v439
      %v441 = vadd.f32 %v433, %v440
      %v442 = vmul.f32 %v441, 0.5
      %v443 = vadd.f32 %v340, %v425
      %v444 = vxor.u32 %v443, 2147483648
      %v445 = vmul.f32 %v444, 1.442695
      %v446 = vpow.pop %v445
      %v447 = vadd.f32 %v446, 1.0
      %v448 = vrcp.pop %v447
      %v449 = vmul.f32 1.0, %v448
      %v450 = vadd.f32 %v343, %v425
      %v451 = vxor.u32 %v450, 2147483648
      %v452 = vmul.f32 %v451, 1.442695
      %v453 = vpow.pop %v452
      %v454 = vadd.f32 %v453, 1.0
      %v455 = vrcp.pop %v454
      %v456 = vmul.f32 1.0, %v455
      %v457 = vadd.f32 %v449, %v456
      %v458 = vmul.f32 %v457, 0.5
      %v459 = vmul.f32 %v442, %v338
      %v461 = vlaneseq
      %v462 = vshrl.u32 %v461, 7
      %v463 = vsub.s32 0, %v462
      %v464 = vrot.slane %v337, %v463
      %466 = vmatprep.subr.mxu0 0.0
      %467 = vmatpush1.msra.mxu0 %v321
      %468 = vmatprep.subr.mxu0 0.0
      %469 = vmatpush1.msra.mxu0 %v322
      %470 = vmatprep.subr.mxu0 0.0
      %471 = vmatpush1.msra.mxu0 %v323
      %472 = vmatprep.subr.mxu0 0.0
      %473 = vmatpush1.msra.mxu0 %v324
      %474 = vmatprep.subr.mxu0 0.0
      %475 = vmatpush1.msra.mxu0 %v325
      %476 = vmatprep.subr.mxu0 0.0
      %477 = vmatpush1.msra.mxu0 %v326
      %478 = vmatprep.subr.mxu0 0.0
      %479 = vmatpush1.msra.mxu0 %v327
      %480 = vmatprep.subr.mxu0 0.0
      %481 = vmatpush1.msra.mxu0 %v328
      %482 = vmatprep.subr.mxu0 0.0
      %483 = vmatpush1.msra.mxu0 %v329
      %484 = vmatprep.subr.mxu0 0.0
      %485 = vmatpush1.msra.mxu0 %v330
      %486 = vmatprep.subr.mxu0 0.0
      %487 = vmatpush1.msra.mxu0 %v331
      %488 = vmatprep.subr.mxu0 0.0
      %489 = vmatpush1.msra.mxu0 %v332
      %490 = vmatprep.subr.mxu0 0.0
      %491 = vmatpush1.msra.mxu0 %v333
      %492 = vmatprep.subr.mxu0 0.0
      %493 = vmatpush1.msra.mxu0 %v334
      %494 = vmatprep.subr.mxu0 0.0
      %495 = vmatpush1.msra.mxu0 %v335
      %496 = vmatprep.subr.mxu0 0.0
      %497 = vmatpush1.msra.mxu0 %v336
      %498 = vmatprep.subr.mxu0 0.0
      %499 = vmatpush1.msra.mxu0 0.0
      %500 = vmatprep.subr.mxu0 0.0
      %501 = vmatpush1.msra.mxu0 0.0
      %502 = vmatprep.subr.mxu0 0.0
      %503 = vmatpush1.msra.mxu0 0.0
      %504 = vmatprep.subr.mxu0 0.0
      %505 = vmatpush1.msra.mxu0 0.0
      %506 = vmatprep.subr.mxu0 0.0
      %507 = vmatpush1.msra.mxu0 0.0
      %508 = vmatprep.subr.mxu0 0.0
      %509 = vmatpush1.msra.mxu0 0.0
      %510 = vmatprep.subr.mxu0 0.0
      %511 = vmatpush1.msra.mxu0 0.0
      %512 = vmatprep.subr.mxu0 0.0
      %513 = vmatpush1.msra.mxu0 0.0
      %514 = vmatprep.subr.mxu0 0.0
      %515 = vmatpush1.msra.mxu0 0.0
      %516 = vmatprep.subr.mxu0 0.0
      %517 = vmatpush1.msra.mxu0 0.0
      %518 = vmatprep.subr.mxu0 0.0
      %519 = vmatpush1.msra.mxu0 0.0
      %520 = vmatprep.subr.mxu0 0.0
      %521 = vmatpush1.msra.mxu0 0.0
      %522 = vmatprep.subr.mxu0 0.0
      %523 = vmatpush1.msra.mxu0 0.0
      %524 = vmatprep.subr.mxu0 0.0
      %525 = vmatpush1.msra.mxu0 0.0
      %526 = vmatprep.subr.mxu0 0.0
      %527 = vmatpush1.msra.mxu0 0.0
      %528 = vmatprep.subr.mxu0 0.0
      %529 = vmatpush1.msra.mxu0 0.0
      %530 = vmatprep.mubr.f32.mxu0 0.0
      %531 = vmatmul.mubr.f32.gmra.mrb[0].mxu0 %v459
      %v532 = vpop.f32.mrb[0].mxu0
      %v533 = vadd.f32 %v464, %v532
      %v534 = vpop.f32.mrb[0].mxu0
      %535 = vdwg.mxu0
      %v536 = vadd.f32 %v341, %v344
      %v537 = vadd.f32 %v536, %v533
      %v538 = vtanh.pop %v537
      %v539 = vsub.f32 1.0, %v458
      %v540 = vmul.f32 %v539, %v538
      %v541 = vmul.f32 %v458, %v338
      %v542 = vadd.f32 %v540, %v541
      %543 = vst [vmem:[#allocation2] sm:$0xff] %v542
      %544 = vst [vmem:[%s281] sm:$0xff] %v542
      %v545 = vld [vmem:[#allocation2] sm:$0xff]
      %s546 = scalar_lea.vmem %s268, 24
      %v547 = vld [vmem:[%s546] sm:$0xff]
      %v548 = vld [vmem:[%s546 + $0x8] sm:$0xff]
      %v549 = vld [vmem:[%s546 + $0x10] sm:$0xff]
      %s550 = scalar_lea.vmem %s275, 24
      %v551 = vld [vmem:[%s550] sm:$0xff]
      %v552 = vld [vmem:[%s550 + $0x8] sm:$0xff]
      %v553 = vld [vmem:[%s550 + $0x10] sm:$0xff]
      %554 = vmatprep.subr.mxu0 %v289
      %555 = vmatpush1.msra.mxu0 %v288
      %556 = vmatprep.subr.mxu0 %v291
      %557 = vmatpush1.msra.mxu0 %v290
      %558 = vmatprep.subr.mxu0 %v293
      %559 = vmatpush1.msra.mxu0 %v292
      %560 = vmatprep.subr.mxu0 %v295
      %561 = vmatpush1.msra.mxu0 %v294
      %562 = vmatprep.subr.mxu0 %v297
      %563 = vmatpush1.msra.mxu0 %v296
      %564 = vmatprep.subr.mxu0 %v299
      %565 = vmatpush1.msra.mxu0 %v298
      %566 = vmatprep.subr.mxu0 %v301
      %567 = vmatpush1.msra.mxu0 %v300
      %568 = vmatprep.subr.mxu0 %v303
      %569 = vmatpush1.msra.mxu0 %v302
      %570 = vmatprep.subr.mxu0 %v305
      %571 = vmatpush1.msra.mxu0 %v304
      %572 = vmatprep.subr.mxu0 %v307
      %573 = vmatpush1.msra.mxu0 %v306
      %574 = vmatprep.subr.mxu0 %v309
      %575 = vmatpush1.msra.mxu0 %v308
      %576 = vmatprep.subr.mxu0 %v311
      %577 = vmatpush1.msra.mxu0 %v310
      %578 = vmatprep.subr.mxu0 %v313
      %579 = vmatpush1.msra.mxu0 %v312
      %580 = vmatprep.subr.mxu0 %v315
      %581 = vmatpush1.msra.mxu0 %v314
      %582 = vmatprep.subr.mxu0 %v317
      %583 = vmatpush1.msra.mxu0 %v316
      %584 = vmatprep.subr.mxu0 %v319
      %585 = vmatpush1.msra.mxu0 %v318
      %586 = vmatprep.subr.mxu0 0.0
      %587 = vmatpush1.msra.mxu0 0.0
      %588 = vmatprep.subr.mxu0 0.0
      %589 = vmatpush1.msra.mxu0 0.0
      %590 = vmatprep.subr.mxu0 0.0
      %591 = vmatpush1.msra.mxu0 0.0
      %592 = vmatprep.subr.mxu0 0.0
      %593 = vmatpush1.msra.mxu0 0.0
      %594 = vmatprep.subr.mxu0 0.0
      %595 = vmatpush1.msra.mxu0 0.0
      %596 = vmatprep.subr.mxu0 0.0
      %597 = vmatpush1.msra.mxu0 0.0
      %598 = vmatprep.subr.mxu0 0.0
      %599 = vmatpush1.msra.mxu0 0.0
      %600 = vmatprep.subr.mxu0 0.0
      %601 = vmatpush1.msra.mxu0 0.0
      %602 = vmatprep.subr.mxu0 0.0
      %603 = vmatpush1.msra.mxu0 0.0
      %604 = vmatprep.subr.mxu0 0.0
      %605 = vmatpush1.msra.mxu0 0.0
      %606 = vmatprep.subr.mxu0 0.0
      %607 = vmatpush1.msra.mxu0 0.0
      %608 = vmatprep.subr.mxu0 0.0
      %609 = vmatpush1.msra.mxu0 0.0
      %610 = vmatprep.subr.mxu0 0.0
      %611 = vmatpush1.msra.mxu0 0.0
      %612 = vmatprep.subr.mxu0 0.0
      %613 = vmatpush1.msra.mxu0 0.0
      %614 = vmatprep.subr.mxu0 0.0
      %615 = vmatpush1.msra.mxu0 0.0
      %616 = vmatprep.subr.mxu0 0.0
      %617 = vmatpush1.msra.mxu0 0.0
      %618 = vmatprep.mubr.f32.mxu0 0.0
      %619 = vmatmul.mubr.f32.gmra.mrb[0].mxu0 %v545
      %v620 = vpop.f32.mrb[0].mxu0
      %v621 = vadd.f32 %v349, %v620
      %v622 = vpop.f32.mrb[0].mxu0
      %v623 = vadd.f32 %v353, %v622
      %624 = vdwg.mxu0
      %v625 = vadd.f32 %v547, %v621
      %v626 = vxor.u32 %v625, 2147483648
      %v627 = vmul.f32 %v626, 1.442695
      %v628 = vpow.pop %v627
      %v629 = vadd.f32 %v628, 1.0
      %v630 = vrcp.pop %v629
      %v631 = vmul.f32 1.0, %v630
      %v632 = vadd.f32 %v551, %v621
      %v633 = vxor.u32 %v632, 2147483648
      %v634 = vmul.f32 %v633, 1.442695
      %v635 = vpow.pop %v634
      %v636 = vadd.f32 %v635, 1.0
      %v637 = vrcp.pop %v636
      %v638 = vmul.f32 1.0, %v637
      %v639 = vadd.f32 %v631, %v638
      %v640 = vmul.f32 %v639, 0.5
      %v641 = vadd.f32 %v548, %v623
      %v642 = vxor.u32 %v641, 2147483648
      %v643 = vmul.f32 %v642, 1.442695
      %v644 = vpow.pop %v643
      %v645 = vadd.f32 %v644, 1.0
      %v646 = vrcp.pop %v645
      %v647 = vmul.f32 1.0, %v646
      %v648 = vadd.f32 %v552, %v623
      %v649 = vxor.u32 %v648, 2147483648
      %v650 = vmul.f32 %v649, 1.442695
      %v651 = vpow.pop %v650
      %v652 = vadd.f32 %v651, 1.0
      %v653 = vrcp.pop %v652
      %v654 = vmul.f32 1.0, %v653
      %v655 = vadd.f32 %v647, %v654
      %v656 = vmul.f32 %v655, 0.5
      %v657 = vmul.f32 %v640, %v545
      %658 = vmatprep.subr.mxu0 0.0
      %659 = vmatpush1.msra.mxu0 %v321
      %660 = vmatprep.subr.mxu0 0.0
      %661 = vmatpush1.msra.mxu0 %v322
      %662 = vmatprep.subr.mxu0 0.0
      %663 = vmatpush1.msra.mxu0 %v323
      %664 = vmatprep.subr.mxu0 0.0
      %665 = vmatpush1.msra.mxu0 %v324
      %666 = vmatprep.subr.mxu0 0.0
      %667 = vmatpush1.msra.mxu0 %v325
      %668 = vmatprep.subr.mxu0 0.0
      %669 = vmatpush1.msra.mxu0 %v326
      %670 = vmatprep.subr.mxu0 0.0
      %671 = vmatpush1.msra.mxu0 %v327
      %672 = vmatprep.subr.mxu0 0.0
      %673 = vmatpush1.msra.mxu0 %v328
      %674 = vmatprep.subr.mxu0 0.0
      %675 = vmatpush1.msra.mxu0 %v329
      %676 = vmatprep.subr.mxu0 0.0
      %677 = vmatpush1.msra.mxu0 %v330
      %678 = vmatprep.subr.mxu0 0.0
      %679 = vmatpush1.msra.mxu0 %v331
      %680 = vmatprep.subr.mxu0 0.0
      %681 = vmatpush1.msra.mxu0 %v332
      %682 = vmatprep.subr.mxu0 0.0
      %683 = vmatpush1.msra.mxu0 %v333
      %684 = vmatprep.subr.mxu0 0.0
      %685 = vmatpush1.msra.mxu0 %v334
      %686 = vmatprep.subr.mxu0 0.0
      %687 = vmatpush1.msra.mxu0 %v335
      %688 = vmatprep.subr.mxu0 0.0
      %689 = vmatpush1.msra.mxu0 %v336
      %690 = vmatprep.subr.mxu0 0.0
      %691 = vmatpush1.msra.mxu0 0.0
      %692 = vmatprep.subr.mxu0 0.0
      %693 = vmatpush1.msra.mxu0 0.0
      %694 = vmatprep.subr.mxu0 0.0
      %695 = vmatpush1.msra.mxu0 0.0
      %696 = vmatprep.subr.mxu0 0.0
      %697 = vmatpush1.msra.mxu0 0.0
      %698 = vmatprep.subr.mxu0 0.0
      %699 = vmatpush1.msra.mxu0 0.0
      %700 = vmatprep.subr.mxu0 0.0
      %701 = vmatpush1.msra.mxu0 0.0
      %702 = vmatprep.subr.mxu0 0.0
      %703 = vmatpush1.msra.mxu0 0.0
      %704 = vmatprep.subr.mxu0 0.0
      %705 = vmatpush1.msra.mxu0 0.0
      %706 = vmatprep.subr.mxu0 0.0
      %707 = vmatpush1.msra.mxu0 0.0
      %708 = vmatprep.subr.mxu0 0.0
      %709 = vmatpush1.msra.mxu0 0.0
      %710 = vmatprep.subr.mxu0 0.0
      %711 = vmatpush1.msra.mxu0 0.0
      %712 = vmatprep.subr.mxu0 0.0
      %713 = vmatpush1.msra.mxu0 0.0
      %714 = vmatprep.subr.mxu0 0.0
      %715 = vmatpush1.msra.mxu0 0.0
      %716 = vmatprep.subr.mxu0 0.0
      %717 = vmatpush1.msra.mxu0 0.0
      %718 = vmatprep.subr.mxu0 0.0
      %719 = vmatpush1.msra.mxu0 0.0
      %720 = vmatprep.subr.mxu0 0.0
      %721 = vmatpush1.msra.mxu0 0.0
      %722 = vmatprep.mubr.f32.mxu0 0.0
      %723 = vmatmul.mubr.f32.gmra.mrb[0].mxu0 %v657
      %v724 = vpop.f32.mrb[0].mxu0
      %v725 = vadd.f32 %v464, %v724
      %v726 = vpop.f32.mrb[0].mxu0
      %727 = vdwg.mxu0
      %v728 = vadd.f32 %v549, %v553
      %v729 = vadd.f32 %v728, %v725
      %v730 = vtanh.pop %v729
      %v731 = vsub.f32 1.0, %v656
      %v732 = vmul.f32 %v731, %v730
      %v733 = vmul.f32 %v656, %v545
      %v734 = vadd.f32 %v732, %v733
      %735 = vst [vmem:[#allocation2] sm:$0xff] %v734
      %s736 = scalar_lea.vmem %s281, 8
      %737 = vst [vmem:[%s736] sm:$0xff] %v734
      %v738 = vld [vmem:[#allocation2] sm:$0xff]
      %s739 = scalar_lea.vmem %s268, 48
      %v740 = vld [vmem:[%s739] sm:$0xff]
      %v741 = vld [vmem:[%s739 + $0x8] sm:$0xff]
      %v742 = vld [vmem:[%s739 + $0x10] sm:$0xff]
      %s743 = scalar_lea.vmem %s275, 48
      %v744 = vld [vmem:[%s743] sm:$0xff]
      %v745 = vld [vmem:[%s743 + $0x8] sm:$0xff]
      %v746 = vld [vmem:[%s743 + $0x10] sm:$0xff]
      %747 = vmatprep.subr.mxu0 %v289
      %748 = vmatpush1.msra.mxu0 %v288
      %749 = vmatprep.subr.mxu0 %v291
      %750 = vmatpush1.msra.mxu0 %v290
      %751 = vmatprep.subr.mxu0 %v293
      %752 = vmatpush1.msra.mxu0 %v292
      %753 = vmatprep.subr.mxu0 %v295
      %754 = vmatpush1.msra.mxu0 %v294
      %755 = vmatprep.subr.mxu0 %v297
      %756 = vmatpush1.msra.mxu0 %v296
      %757 = vmatprep.subr.mxu0 %v299
      %758 = vmatpush1.msra.mxu0 %v298
      %759 = vmatprep.subr.mxu0 %v301
      %760 = vmatpush1.msra.mxu0 %v300
      %761 = vmatprep.subr.mxu0 %v303
      %762 = vmatpush1.msra.mxu0 %v302
      %763 = vmatprep.subr.mxu0 %v305
      %764 = vmatpush1.msra.mxu0 %v304
      %765 = vmatprep.subr.mxu0 %v307
      %766 = vmatpush1.msra.mxu0 %v306
      %767 = vmatprep.subr.mxu0 %v309
      %768 = vmatpush1.msra.mxu0 %v308
      %769 = vmatprep.subr.mxu0 %v311
      %770 = vmatpush1.msra.mxu0 %v310
      %771 = vmatprep.subr.mxu0 %v313
      %772 = vmatpush1.msra.mxu0 %v312
      %773 = vmatprep.subr.mxu0 %v315
      %774 = vmatpush1.msra.mxu0 %v314
      %775 = vmatprep.subr.mxu0 %v317
      %776 = vmatpush1.msra.mxu0 %v316
      %777 = vmatprep.subr.mxu0 %v319
      %778 = vmatpush1.msra.mxu0 %v318
      %779 = vmatprep.subr.mxu0 0.0
      %780 = vmatpush1.msra.mxu0 0.0
      %781 = vmatprep.subr.mxu0 0.0
      %782 = vmatpush1.msra.mxu0 0.0
      %783 = vmatprep.subr.mxu0 0.0
      %784 = vmatpush1.msra.mxu0 0.0
      %785 = vmatprep.subr.mxu0 0.0
      %786 = vmatpush1.msra.mxu0 0.0
      %787 = vmatprep.subr.mxu0 0.0
      %788 = vmatpush1.msra.mxu0 0.0
      %789 = vmatprep.subr.mxu0 0.0
      %790 = vmatpush1.msra.mxu0 0.0
      %791 = vmatprep.subr.mxu0 0.0
      %792 = vmatpush1.msra.mxu0 0.0
      %793 = vmatprep.subr.mxu0 0.0
      %794 = vmatpush1.msra.mxu0 0.0
      %795 = vmatprep.subr.mxu0 0.0
      %796 = vmatpush1.msra.mxu0 0.0
      %797 = vmatprep.subr.mxu0 0.0
      %798 = vmatpush1.msra.mxu0 0.0
      %799 = vmatprep.subr.mxu0 0.0
      %800 = vmatpush1.msra.mxu0 0.0
      %801 = vmatprep.subr.mxu0 0.0
      %802 = vmatpush1.msra.mxu0 0.0
      %803 = vmatprep.subr.mxu0 0.0
      %804 = vmatpush1.msra.mxu0 0.0
      %805 = vmatprep.subr.mxu0 0.0
      %806 = vmatpush1.msra.mxu0 0.0
      %807 = vmatprep.subr.mxu0 0.0
      %808 = vmatpush1.msra.mxu0 0.0
      %809 = vmatprep.subr.mxu0 0.0
      %810 = vmatpush1.msra.mxu0 0.0
      %811 = vmatprep.mubr.f32.mxu0 0.0
      %812 = vmatmul.mubr.f32.gmra.mrb[0].mxu0 %v738
      %v813 = vpop.f32.mrb[0].mxu0
      %v814 = vadd.f32 %v349, %v813
      %v815 = vpop.f32.mrb[0].mxu0
      %v816 = vadd.f32 %v353, %v815
      %817 = vdwg.mxu0
      %v818 = vadd.f32 %v740, %v814
      %v819 = vxor.u32 %v818, 2147483648
      %v820 = vmul.f32 %v819, 1.442695
      %v821 = vpow.pop %v820
      %v822 = vadd.f32 %v821, 1.0
      %v823 = vrcp.pop %v822
      %v824 = vmul.f32 1.0, %v823
      %v825 = vadd.f32 %v744, %v814
      %v826 = vxor.u32 %v825, 2147483648
      %v827 = vmul.f32 %v826, 1.442695
      %v828 = vpow.pop %v827
      %v829 = vadd.f32 %v828, 1.0
      %v830 = vrcp.pop %v829
      %v831 = vmul.f32 1.0, %v830
      %v832 = vadd.f32 %v824, %v831
      %v833 = vmul.f32 %v832, 0.5
      %v834 = vadd.f32 %v741, %v816
      %v835 = vxor.u32 %v834, 2147483648
      %v836 = vmul.f32 %v835, 1.442695
      %v837 = vpow.pop %v836
      %v838 = vadd.f32 %v837, 1.0
      %v839 = vrcp.pop %v838
      %v840 = vmul.f32 1.0, %v839
      %v841 = vadd.f32 %v745, %v816
      %v842 = vxor.u32 %v841, 2147483648
      %v843 = vmul.f32 %v842, 1.442695
      %v844 = vpow.pop %v843
      %v845 = vadd.f32 %v844, 1.0
      %v846 = vrcp.pop %v845
      %v847 = vmul.f32 1.0, %v846
      %v848 = vadd.f32 %v840, %v847
      %v849 = vmul.f32 %v848, 0.5
      %v850 = vmul.f32 %v833, %v738
      %851 = vmatprep.subr.mxu0 0.0
      %852 = vmatpush1.msra.mxu0 %v321
      %853 = vmatprep.subr.mxu0 0.0
      %854 = vmatpush1.msra.mxu0 %v322
      %855 = vmatprep.subr.mxu0 0.0
      %856 = vmatpush1.msra.mxu0 %v323
      %857 = vmatprep.subr.mxu0 0.0
      %858 = vmatpush1.msra.mxu0 %v324
      %859 = vmatprep.subr.mxu0 0.0
      %860 = vmatpush1.msra.mxu0 %v325
      %861 = vmatprep.subr.mxu0 0.0
      %862 = vmatpush1.msra.mxu0 %v326
      %863 = vmatprep.subr.mxu0 0.0
      %864 = vmatpush1.msra.mxu0 %v327
      %865 = vmatprep.subr.mxu0 0.0
      %866 = vmatpush1.msra.mxu0 %v328
      %867 = vmatprep.subr.mxu0 0.0
      %868 = vmatpush1.msra.mxu0 %v329
      %869 = vmatprep.subr.mxu0 0.0
      %870 = vmatpush1.msra.mxu0 %v330
      %871 = vmatprep.subr.mxu0 0.0
      %872 = vmatpush1.msra.mxu0 %v331
      %873 = vmatprep.subr.mxu0 0.0
      %874 = vmatpush1.msra.mxu0 %v332
      %875 = vmatprep.subr.mxu0 0.0
      %876 = vmatpush1.msra.mxu0 %v333
      %877 = vmatprep.subr.mxu0 0.0
      %878 = vmatpush1.msra.mxu0 %v334
      %879 = vmatprep.subr.mxu0 0.0
      %880 = vmatpush1.msra.mxu0 %v335
      %881 = vmatprep.subr.mxu0 0.0
      %882 = vmatpush1.msra.mxu0 %v336
      %883 = vmatprep.subr.mxu0 0.0
      %884 = vmatpush1.msra.mxu0 0.0
      %885 = vmatprep.subr.mxu0 0.0
      %886 = vmatpush1.msra.mxu0 0.0
      %887 = vmatprep.subr.mxu0 0.0
      %888 = vmatpush1.msra.mxu0 0.0
      %889 = vmatprep.subr.mxu0 0.0
      %890 = vmatpush1.msra.mxu0 0.0
      %891 = vmatprep.subr.mxu0 0.0
      %892 = vmatpush1.msra.mxu0 0.0
      %893 = vmatprep.subr.mxu0 0.0
      %894 = vmatpush1.msra.mxu0 0.0
      %895 = vmatprep.subr.mxu0 0.0
      %896 = vmatpush1.msra.mxu0 0.0
      %897 = vmatprep.subr.mxu0 0.0
      %898 = vmatpush1.msra.mxu0 0.0
      %899 = vmatprep.subr.mxu0 0.0
      %900 = vmatpush1.msra.mxu0 0.0
      %901 = vmatprep.subr.mxu0 0.0
      %902 = vmatpush1.msra.mxu0 0.0
      %903 = vmatprep.subr.mxu0 0.0
      %904 = vmatpush1.msra.mxu0 0.0
      %905 = vmatprep.subr.mxu0 0.0
      %906 = vmatpush1.msra.mxu0 0.0
      %907 = vmatprep.subr.mxu0 0.0
      %908 = vmatpush1.msra.mxu0 0.0
      %909 = vmatprep.subr.mxu0 0.0
      %910 = vmatpush1.msra.mxu0 0.0
      %911 = vmatprep.subr.mxu0 0.0
      %912 = vmatpush1.msra.mxu0 0.0
      %913 = vmatprep.subr.mxu0 0.0
      %914 = vmatpush1.msra.mxu0 0.0
      %915 = vmatprep.mubr.f32.mxu0 0.0
      %916 = vmatmul.mubr.f32.gmra.mrb[0].mxu0 %v850
      %v917 = vpop.f32.mrb[0].mxu0
      %v918 = vadd.f32 %v464, %v917
      %v919 = vpop.f32.mrb[0].mxu0
      %920 = vdwg.mxu0
      %v921 = vadd.f32 %v742, %v746
      %v922 = vadd.f32 %v921, %v918
      %v923 = vtanh.pop %v922
      %v924 = vsub.f32 1.0, %v849
      %v925 = vmul.f32 %v924, %v923
      %v926 = vmul.f32 %v849, %v738
      %v927 = vadd.f32 %v925, %v926
      %928 = vst [vmem:[#allocation2] sm:$0xff] %v927
      %s929 = scalar_lea.vmem %s281, 16
      %930 = vst [vmem:[%s929] sm:$0xff] %v927
      %v931 = vld [vmem:[#allocation2] sm:$0xff]
      %s932 = scalar_lea.vmem %s268, 72
      %v933 = vld [vmem:[%s932] sm:$0xff]
      %v934 = vld [vmem:[%s932 + $0x8] sm:$0xff]
      %v935 = vld [vmem:[%s932 + $0x10] sm:$0xff]
      %s936 = scalar_lea.vmem %s275, 72
      %v937 = vld [vmem:[%s936] sm:$0xff]
      %v938 = vld [vmem:[%s936 + $0x8] sm:$0xff]
      %v939 = vld [vmem:[%s936 + $0x10] sm:$0xff]
      %940 = vmatprep.subr.mxu0 %v289
      %941 = vmatpush1.msra.mxu0 %v288
      %942 = vmatprep.subr.mxu0 %v291
      %943 = vmatpush1.msra.mxu0 %v290
      %944 = vmatprep.subr.mxu0 %v293
      %945 = vmatpush1.msra.mxu0 %v292
      %946 = vmatprep.subr.mxu0 %v295
      %947 = vmatpush1.msra.mxu0 %v294
      %948 = vmatprep.subr.mxu0 %v297
      %949 = vmatpush1.msra.mxu0 %v296
      %950 = vmatprep.subr.mxu0 %v299
      %951 = vmatpush1.msra.mxu0 %v298
      %952 = vmatprep.subr.mxu0 %v301
      %953 = vmatpush1.msra.mxu0 %v300
      %954 = vmatprep.subr.mxu0 %v303
      %955 = vmatpush1.msra.mxu0 %v302
      %956 = vmatprep.subr.mxu0 %v305
      %957 = vmatpush1.msra.mxu0 %v304
      %958 = vmatprep.subr.mxu0 %v307
      %959 = vmatpush1.msra.mxu0 %v306
      %960 = vmatprep.subr.mxu0 %v309
      %961 = vmatpush1.msra.mxu0 %v308
      %962 = vmatprep.subr.mxu0 %v311
      %963 = vmatpush1.msra.mxu0 %v310
      %964 = vmatprep.subr.mxu0 %v313
      %965 = vmatpush1.msra.mxu0 %v312
      %966 = vmatprep.subr.mxu0 %v315
      %967 = vmatpush1.msra.mxu0 %v314
      %968 = vmatprep.subr.mxu0 %v317
      %969 = vmatpush1.msra.mxu0 %v316
      %970 = vmatprep.subr.mxu0 %v319
      %971 = vmatpush1.msra.mxu0 %v318
      %972 = vmatprep.subr.mxu0 0.0
      %973 = vmatpush1.msra.mxu0 0.0
      %974 = vmatprep.subr.mxu0 0.0
      %975 = vmatpush1.msra.mxu0 0.0
      %976 = vmatprep.subr.mxu0 0.0
      %977 = vmatpush1.msra.mxu0 0.0
      %978 = vmatprep.subr.mxu0 0.0
      %979 = vmatpush1.msra.mxu0 0.0
      %980 = vmatprep.subr.mxu0 0.0
      %981 = vmatpush1.msra.mxu0 0.0
      %982 = vmatprep.subr.mxu0 0.0
      %983 = vmatpush1.msra.mxu0 0.0
      %984 = vmatprep.subr.mxu0 0.0
      %985 = vmatpush1.msra.mxu0 0.0
      %986 = vmatprep.subr.mxu0 0.0
      %987 = vmatpush1.msra.mxu0 0.0
      %988 = vmatprep.subr.mxu0 0.0
      %989 = vmatpush1.msra.mxu0 0.0
      %990 = vmatprep.subr.mxu0 0.0
      %991 = vmatpush1.msra.mxu0 0.0
      %992 = vmatprep.subr.mxu0 0.0
      %993 = vmatpush1.msra.mxu0 0.0
      %994 = vmatprep.subr.mxu0 0.0
      %995 = vmatpush1.msra.mxu0 0.0
      %996 = vmatprep.subr.mxu0 0.0
      %997 = vmatpush1.msra.mxu0 0.0
      %998 = vmatprep.subr.mxu0 0.0
      %999 = vmatpush1.msra.mxu0 0.0
      %1000 = vmatprep.subr.mxu0 0.0
      %1001 = vmatpush1.msra.mxu0 0.0
      %1002 = vmatprep.subr.mxu0 0.0
      %1003 = vmatpush1.msra.mxu0 0.0
      %1004 = vmatprep.mubr.f32.mxu0 0.0
      %1005 = vmatmul.mubr.f32.gmra.mrb[0].mxu0 %v931
      %v1006 = vpop.f32.mrb[0].mxu0
      %v1007 = vadd.f32 %v349, %v1006
      %v1008 = vpop.f32.mrb[0].mxu0
      %v1009 = vadd.f32 %v353, %v1008
      %1010 = vdwg.mxu0
      %v1011 = vadd.f32 %v933, %v1007
      %v1012 = vxor.u32 %v1011, 2147483648
      %v1013 = vmul.f32 %v1012, 1.442695
      %v1014 = vpow.pop %v1013
      %v1015 = vadd.f32 %v1014, 1.0
      %v1016 = vrcp.pop %v1015
      %v1017 = vmul.f32 1.0, %v1016
      %v1018 = vadd.f32 %v937, %v1007
      %v1019 = vxor.u32 %v1018, 2147483648
      %v1020 = vmul.f32 %v1019, 1.442695
      %v1021 = vpow.pop %v1020
      %v1022 = vadd.f32 %v1021, 1.0
      %v1023 = vrcp.pop %v1022
      %v1024 = vmul.f32 1.0, %v1023
      %v1025 = vadd.f32 %v1017, %v1024
      %v1026 = vmul.f32 %v1025, 0.5
      %v1027 = vadd.f32 %v934, %v1009
      %v1028 = vxor.u32 %v1027, 2147483648
      %v1029 = vmul.f32 %v1028, 1.442695
      %v1030 = vpow.pop %v1029
      %v1031 = vadd.f32 %v1030, 1.0
      %v1032 = vrcp.pop %v1031
      %v1033 = vmul.f32 1.0, %v1032
      %v1034 = vadd.f32 %v938, %v1009
      %v1035 = vxor.u32 %v1034, 2147483648
      %v1036 = vmul.f32 %v1035, 1.442695
      %v1037 = vpow.pop %v1036
      %v1038 = vadd.f32 %v1037, 1.0
      %v1039 = vrcp.pop %v1038
      %v1040 = vmul.f32 1.0, %v1039
      %v1041 = vadd.f32 %v1033, %v1040
      %v1042 = vmul.f32 %v1041, 0.5
      %v1043 = vmul.f32 %v1026, %v931
      %1044 = vmatprep.subr.mxu0 0.0
      %1045 = vmatpush1.msra.mxu0 %v321
      %1046 = vmatprep.subr.mxu0 0.0
      %1047 = vmatpush1.msra.mxu0 %v322
      %1048 = vmatprep.subr.mxu0 0.0
      %1049 = vmatpush1.msra.mxu0 %v323
      %1050 = vmatprep.subr.mxu0 0.0
      %1051 = vmatpush1.msra.mxu0 %v324
      %1052 = vmatprep.subr.mxu0 0.0
      %1053 = vmatpush1.msra.mxu0 %v325
      %1054 = vmatprep.subr.mxu0 0.0
      %1055 = vmatpush1.msra.mxu0 %v326
      %1056 = vmatprep.subr.mxu0 0.0
      %1057 = vmatpush1.msra.mxu0 %v327
      %1058 = vmatprep.subr.mxu0 0.0
      %1059 = vmatpush1.msra.mxu0 %v328
      %1060 = vmatprep.subr.mxu0 0.0
      %1061 = vmatpush1.msra.mxu0 %v329
      %1062 = vmatprep.subr.mxu0 0.0
      %1063 = vmatpush1.msra.mxu0 %v330
      %1064 = vmatprep.subr.mxu0 0.0
      %1065 = vmatpush1.msra.mxu0 %v331
      %1066 = vmatprep.subr.mxu0 0.0
      %1067 = vmatpush1.msra.mxu0 %v332
      %1068 = vmatprep.subr.mxu0 0.0
      %1069 = vmatpush1.msra.mxu0 %v333
      %1070 = vmatprep.subr.mxu0 0.0
      %1071 = vmatpush1.msra.mxu0 %v334
      %1072 = vmatprep.subr.mxu0 0.0
      %1073 = vmatpush1.msra.mxu0 %v335
      %1074 = vmatprep.subr.mxu0 0.0
      %1075 = vmatpush1.msra.mxu0 %v336
      %1076 = vmatprep.subr.mxu0 0.0
      %1077 = vmatpush1.msra.mxu0 0.0
      %1078 = vmatprep.subr.mxu0 0.0
      %1079 = vmatpush1.msra.mxu0 0.0
      %1080 = vmatprep.subr.mxu0 0.0
      %1081 = vmatpush1.msra.mxu0 0.0
      %1082 = vmatprep.subr.mxu0 0.0
      %1083 = vmatpush1.msra.mxu0 0.0
      %1084 = vmatprep.subr.mxu0 0.0
      %1085 = vmatpush1.msra.mxu0 0.0
      %1086 = vmatprep.subr.mxu0 0.0
      %1087 = vmatpush1.msra.mxu0 0.0
      %1088 = vmatprep.subr.mxu0 0.0
      %1089 = vmatpush1.msra.mxu0 0.0
      %1090 = vmatprep.subr.mxu0 0.0
      %1091 = vmatpush1.msra.mxu0 0.0
      %1092 = vmatprep.subr.mxu0 0.0
      %1093 = vmatpush1.msra.mxu0 0.0
      %1094 = vmatprep.subr.mxu0 0.0
      %1095 = vmatpush1.msra.mxu0 0.0
      %1096 = vmatprep.subr.mxu0 0.0
      %1097 = vmatpush1.msra.mxu0 0.0
      %1098 = vmatprep.subr.mxu0 0.0
      %1099 = vmatpush1.msra.mxu0 0.0
      %1100 = vmatprep.subr.mxu0 0.0
      %1101 = vmatpush1.msra.mxu0 0.0
      %1102 = vmatprep.subr.mxu0 0.0
      %1103 = vmatpush1.msra.mxu0 0.0
      %1104 = vmatprep.subr.mxu0 0.0
      %1105 = vmatpush1.msra.mxu0 0.0
      %1106 = vmatprep.subr.mxu0 0.0
      %1107 = vmatpush1.msra.mxu0 0.0
      %1108 = vmatprep.mubr.f32.mxu0 0.0
      %1109 = vmatmul.mubr.f32.gmra.mrb[0].mxu0 %v1043
      %v1110 = vpop.f32.mrb[0].mxu0
      %v1111 = vadd.f32 %v464, %v1110
      %v1112 = vpop.f32.mrb[0].mxu0
      %1113 = vdwg.mxu0
      %v1114 = vadd.f32 %v935, %v939
      %v1115 = vadd.f32 %v1114, %v1111
      %v1116 = vtanh.pop %v1115
      %v1117 = vsub.f32 1.0, %v1042
      %v1118 = vmul.f32 %v1117, %v1116
      %v1119 = vmul.f32 %v1042, %v931
      %v1120 = vadd.f32 %v1118, %v1119
      %1121 = vst [vmem:[#allocation2] sm:$0xff] %v1120
      %s1122 = scalar_lea.vmem %s281, 24
      %1123 = vst [vmem:[%s1122] sm:$0xff] %v1120
      %v1124 = vld [vmem:[#allocation2] sm:$0xff]
      %s1125 = scalar_lea.vmem %s268, 96
      %v1126 = vld [vmem:[%s1125] sm:$0xff]
      %v1127 = vld [vmem:[%s1125 + $0x8] sm:$0xff]
      %v1128 = vld [vmem:[%s1125 + $0x10] sm:$0xff]
      %s1129 = scalar_lea.vmem %s275, 96
      %v1130 = vld [vmem:[%s1129] sm:$0xff]
      %v1131 = vld [vmem:[%s1129 + $0x8] sm:$0xff]
      %v1132 = vld [vmem:[%s1129 + $0x10] sm:$0xff]
      %1133 = vmatprep.subr.mxu0 %v289
      %1134 = vmatpush1.msra.mxu0 %v288
      %1135 = vmatprep.subr.mxu0 %v291
      %1136 = vmatpush1.msra.mxu0 %v290
      %1137 = vmatprep.subr.mxu0 %v293
      %1138 = vmatpush1.msra.mxu0 %v292
      %1139 = vmatprep.subr.mxu0 %v295
      %1140 = vmatpush1.msra.mxu0 %v294
      %1141 = vmatprep.subr.mxu0 %v297
      %1142 = vmatpush1.msra.mxu0 %v296
      %1143 = vmatprep.subr.mxu0 %v299
      %1144 = vmatpush1.msra.mxu0 %v298
      %1145 = vmatprep.subr.mxu0 %v301
      %1146 = vmatpush1.msra.mxu0 %v300
      %1147 = vmatprep.subr.mxu0 %v303
      %1148 = vmatpush1.msra.mxu0 %v302
      %1149 = vmatprep.subr.mxu0 %v305
      %1150 = vmatpush1.msra.mxu0 %v304
      %1151 = vmatprep.subr.mxu0 %v307
      %1152 = vmatpush1.msra.mxu0 %v306
      %1153 = vmatprep.subr.mxu0 %v309
      %1154 = vmatpush1.msra.mxu0 %v308
      %1155 = vmatprep.subr.mxu0 %v311
      %1156 = vmatpush1.msra.mxu0 %v310
      %1157 = vmatprep.subr.mxu0 %v313
      %1158 = vmatpush1.msra.mxu0 %v312
      %1159 = vmatprep.subr.mxu0 %v315
      %1160 = vmatpush1.msra.mxu0 %v314
      %1161 = vmatprep.subr.mxu0 %v317
      %1162 = vmatpush1.msra.mxu0 %v316
      %1163 = vmatprep.subr.mxu0 %v319
      %1164 = vmatpush1.msra.mxu0 %v318
      %1165 = vmatprep.subr.mxu0 0.0
      %1166 = vmatpush1.msra.mxu0 0.0
      %1167 = vmatprep.subr.mxu0 0.0
      %1168 = vmatpush1.msra.mxu0 0.0
      %1169 = vmatprep.subr.mxu0 0.0
      %1170 = vmatpush1.msra.mxu0 0.0
      %1171 = vmatprep.subr.mxu0 0.0
      %1172 = vmatpush1.msra.mxu0 0.0
      %1173 = vmatprep.subr.mxu0 0.0
      %1174 = vmatpush1.msra.mxu0 0.0
      %1175 = vmatprep.subr.mxu0 0.0
      %1176 = vmatpush1.msra.mxu0 0.0
      %1177 = vmatprep.subr.mxu0 0.0
      %1178 = vmatpush1.msra.mxu0 0.0
      %1179 = vmatprep.subr.mxu0 0.0
      %1180 = vmatpush1.msra.mxu0 0.0
      %1181 = vmatprep.subr.mxu0 0.0
      %1182 = vmatpush1.msra.mxu0 0.0
      %1183 = vmatprep.subr.mxu0 0.0
      %1184 = vmatpush1.msra.mxu0 0.0
      %1185 = vmatprep.subr.mxu0 0.0
      %1186 = vmatpush1.msra.mxu0 0.0
      %1187 = vmatprep.subr.mxu0 0.0
      %1188 = vmatpush1.msra.mxu0 0.0
      %1189 = vmatprep.subr.mxu0 0.0
      %1190 = vmatpush1.msra.mxu0 0.0
      %1191 = vmatprep.subr.mxu0 0.0
      %1192 = vmatpush1.msra.mxu0 0.0
      %1193 = vmatprep.subr.mxu0 0.0
      %1194 = vmatpush1.msra.mxu0 0.0
      %1195 = vmatprep.subr.mxu0 0.0
      %1196 = vmatpush1.msra.mxu0 0.0
      %1197 = vmatprep.mubr.f32.mxu0 0.0
      %1198 = vmatmul.mubr.f32.gmra.mrb[0].mxu0 %v1124
      %v1199 = vpop.f32.mrb[0].mxu0
      %v1200 = vadd.f32 %v349, %v1199
      %v1201 = vpop.f32.mrb[0].mxu0
      %v1202 = vadd.f32 %v353, %v1201
      %1203 = vdwg.mxu0
      %v1204 = vadd.f32 %v1126, %v1200
      %v1205 = vxor.u32 %v1204, 2147483648
      %v1206 = vmul.f32 %v1205, 1.442695
      %v1207 = vpow.pop %v1206
      %v1208 = vadd.f32 %v1207, 1.0
      %v1209 = vrcp.pop %v1208
      %v1210 = vmul.f32 1.0, %v1209
      %v1211 = vadd.f32 %v1130, %v1200
      %v1212 = vxor.u32 %v1211, 2147483648
      %v1213 = vmul.f32 %v1212, 1.442695
      %v1214 = vpow.pop %v1213
      %v1215 = vadd.f32 %v1214, 1.0
      %v1216 = vrcp.pop %v1215
      %v1217 = vmul.f32 1.0, %v1216
      %v1218 = vadd.f32 %v1210, %v1217
      %v1219 = vmul.f32 %v1218, 0.5
      %v1220 = vadd.f32 %v1127, %v1202
      %v1221 = vxor.u32 %v1220, 2147483648
      %v1222 = vmul.f32 %v1221, 1.442695
      %v1223 = vpow.pop %v1222
      %v1224 = vadd.f32 %v1223, 1.0
      %v1225 = vrcp.pop %v1224
      %v1226 = vmul.f32 1.0, %v1225
      %v1227 = vadd.f32 %v1131, %v1202
      %v1228 = vxor.u32 %v1227, 2147483648
      %v1229 = vmul.f32 %v1228, 1.442695
      %v1230 = vpow.pop %v1229
      %v1231 = vadd.f32 %v1230, 1.0
      %v1232 = vrcp.pop %v1231
      %v1233 = vmul.f32 1.0, %v1232
      %v1234 = vadd.f32 %v1226, %v1233
      %v1235 = vmul.f32 %v1234, 0.5
      %v1236 = vmul.f32 %v1219, %v1124
      %1237 = vmatprep.subr.mxu0 0.0
      %1238 = vmatpush1.msra.mxu0 %v321
      %1239 = vmatprep.subr.mxu0 0.0
      %1240 = vmatpush1.msra.mxu0 %v322
      %1241 = vmatprep.subr.mxu0 0.0
      %1242 = vmatpush1.msra.mxu0 %v323
      %1243 = vmatprep.subr.mxu0 0.0
      %1244 = vmatpush1.msra.mxu0 %v324
      %1245 = vmatprep.subr.mxu0 0.0
      %1246 = vmatpush1.msra.mxu0 %v325
      %1247 = vmatprep.subr.mxu0 0.0
      %1248 = vmatpush1.msra.mxu0 %v326
      %1249 = vmatprep.subr.mxu0 0.0
      %1250 = vmatpush1.msra.mxu0 %v327
      %1251 = vmatprep.subr.mxu0 0.0
      %1252 = vmatpush1.msra.mxu0 %v328
      %1253 = vmatprep.subr.mxu0 0.0
      %1254 = vmatpush1.msra.mxu0 %v329
      %1255 = vmatprep.subr.mxu0 0.0
      %1256 = vmatpush1.msra.mxu0 %v330
      %1257 = vmatprep.subr.mxu0 0.0
      %1258 = vmatpush1.msra.mxu0 %v331
      %1259 = vmatprep.subr.mxu0 0.0
      %1260 = vmatpush1.msra.mxu0 %v332
      %1261 = vmatprep.subr.mxu0 0.0
      %1262 = vmatpush1.msra.mxu0 %v333
      %1263 = vmatprep.subr.mxu0 0.0
      %1264 = vmatpush1.msra.mxu0 %v334
      %1265 = vmatprep.subr.mxu0 0.0
      %1266 = vmatpush1.msra.mxu0 %v335
      %1267 = vmatprep.subr.mxu0 0.0
      %1268 = vmatpush1.msra.mxu0 %v336
      %1269 = vmatprep.subr.mxu0 0.0
      %1270 = vmatpush1.msra.mxu0 0.0
      %1271 = vmatprep.subr.mxu0 0.0
      %1272 = vmatpush1.msra.mxu0 0.0
      %1273 = vmatprep.subr.mxu0 0.0
      %1274 = vmatpush1.msra.mxu0 0.0
      %1275 = vmatprep.subr.mxu0 0.0
      %1276 = vmatpush1.msra.mxu0 0.0
      %1277 = vmatprep.subr.mxu0 0.0
      %1278 = vmatpush1.msra.mxu0 0.0
      %1279 = vmatprep.subr.mxu0 0.0
      %1280 = vmatpush1.msra.mxu0 0.0
      %1281 = vmatprep.subr.mxu0 0.0
      %1282 = vmatpush1.msra.mxu0 0.0
      %1283 = vmatprep.subr.mxu0 0.0
      %1284 = vmatpush1.msra.mxu0 0.0
      %1285 = vmatprep.subr.mxu0 0.0
      %1286 = vmatpush1.msra.mxu0 0.0
      %1287 = vmatprep.subr.mxu0 0.0
      %1288 = vmatpush1.msra.mxu0 0.0
      %1289 = vmatprep.subr.mxu0 0.0
      %1290 = vmatpush1.msra.mxu0 0.0
      %1291 = vmatprep.subr.mxu0 0.0
      %1292 = vmatpush1.msra.mxu0 0.0
      %1293 = vmatprep.subr.mxu0 0.0
      %1294 = vmatpush1.msra.mxu0 0.0
      %1295 = vmatprep.subr.mxu0 0.0
      %1296 = vmatpush1.msra.mxu0 0.0
      %1297 = vmatprep.subr.mxu0 0.0
      %1298 = vmatpush1.msra.mxu0 0.0
      %1299 = vmatprep.subr.mxu0 0.0
      %1300 = vmatpush1.msra.mxu0 0.0
      %1301 = vmatprep.mubr.f32.mxu0 0.0
      %1302 = vmatmul.mubr.f32.gmra.mrb[0].mxu0 %v1236
      %v1303 = vpop.f32.mrb[0].mxu0
      %v1304 = vadd.f32 %v464, %v1303
      %v1305 = vpop.f32.mrb[0].mxu0
      %1306 = vdwg.mxu0
      %v1307 = vadd.f32 %v1128, %v1132
      %v1308 = vadd.f32 %v1307, %v1304
      %v1309 = vtanh.pop %v1308
      %v1310 = vsub.f32 1.0, %v1235
      %v1311 = vmul.f32 %v1310, %v1309
      %v1312 = vmul.f32 %v1235, %v1124
      %v1313 = vadd.f32 %v1311, %v1312
      %1314 = vst [vmem:[#allocation2] sm:$0xff] %v1313
      %s1315 = scalar_lea.vmem %s281, 32
      %1316 = vst [vmem:[%s1315] sm:$0xff] %v1313
      %v1317 = vld [vmem:[#allocation2] sm:$0xff]
      %s1318 = scalar_lea.vmem %s268, 120
      %v1319 = vld [vmem:[%s1318] sm:$0xff]
      %v1320 = vld [vmem:[%s1318 + $0x8] sm:$0xff]
      %v1321 = vld [vmem:[%s1318 + $0x10] sm:$0xff]
      %s1322 = scalar_lea.vmem %s275, 120
      %v1323 = vld [vmem:[%s1322] sm:$0xff]
      %v1324 = vld [vmem:[%s1322 + $0x8] sm:$0xff]
      %v1325 = vld [vmem:[%s1322 + $0x10] sm:$0xff]
      %1326 = vmatprep.subr.mxu0 %v289
      %1327 = vmatpush1.msra.mxu0 %v288
      %1328 = vmatprep.subr.mxu0 %v291
      %1329 = vmatpush1.msra.mxu0 %v290
      %1330 = vmatprep.subr.mxu0 %v293
      %1331 = vmatpush1.msra.mxu0 %v292
      %1332 = vmatprep.subr.mxu0 %v295
      %1333 = vmatpush1.msra.mxu0 %v294
      %1334 = vmatprep.subr.mxu0 %v297
      %1335 = vmatpush1.msra.mxu0 %v296
      %1336 = vmatprep.subr.mxu0 %v299
      %1337 = vmatpush1.msra.mxu0 %v298
      %1338 = vmatprep.subr.mxu0 %v301
      %1339 = vmatpush1.msra.mxu0 %v300
      %1340 = vmatprep.subr.mxu0 %v303
      %1341 = vmatpush1.msra.mxu0 %v302
      %1342 = vmatprep.subr.mxu0 %v305
      %1343 = vmatpush1.msra.mxu0 %v304
      %1344 = vmatprep.subr.mxu0 %v307
      %1345 = vmatpush1.msra.mxu0 %v306
      %1346 = vmatprep.subr.mxu0 %v309
      %1347 = vmatpush1.msra.mxu0 %v308
      %1348 = vmatprep.subr.mxu0 %v311
      %1349 = vmatpush1.msra.mxu0 %v310
      %1350 = vmatprep.subr.mxu0 %v313
      %1351 = vmatpush1.msra.mxu0 %v312
      %1352 = vmatprep.subr.mxu0 %v315
      %1353 = vmatpush1.msra.mxu0 %v314
      %1354 = vmatprep.subr.mxu0 %v317
      %1355 = vmatpush1.msra.mxu0 %v316
      %1356 = vmatprep.subr.mxu0 %v319
      %1357 = vmatpush1.msra.mxu0 %v318
      %1358 = vmatprep.subr.mxu0 0.0
      %1359 = vmatpush1.msra.mxu0 0.0
      %1360 = vmatprep.subr.mxu0 0.0
      %1361 = vmatpush1.msra.mxu0 0.0
      %1362 = vmatprep.subr.mxu0 0.0
      %1363 = vmatpush1.msra.mxu0 0.0
      %1364 = vmatprep.subr.mxu0 0.0
      %1365 = vmatpush1.msra.mxu0 0.0
      %1366 = vmatprep.subr.mxu0 0.0
      %1367 = vmatpush1.msra.mxu0 0.0
      %1368 = vmatprep.subr.mxu0 0.0
      %1369 = vmatpush1.msra.mxu0 0.0
      %1370 = vmatprep.subr.mxu0 0.0
      %1371 = vmatpush1.msra.mxu0 0.0
      %1372 = vmatprep.subr.mxu0 0.0
      %1373 = vmatpush1.msra.mxu0 0.0
      %1374 = vmatprep.subr.mxu0 0.0
      %1375 = vmatpush1.msra.mxu0 0.0
      %1376 = vmatprep.subr.mxu0 0.0
      %1377 = vmatpush1.msra.mxu0 0.0
      %1378 = vmatprep.subr.mxu0 0.0
      %1379 = vmatpush1.msra.mxu0 0.0
      %1380 = vmatprep.subr.mxu0 0.0
      %1381 = vmatpush1.msra.mxu0 0.0
      %1382 = vmatprep.subr.mxu0 0.0
      %1383 = vmatpush1.msra.mxu0 0.0
      %1384 = vmatprep.subr.mxu0 0.0
      %1385 = vmatpush1.msra.mxu0 0.0
      %1386 = vmatprep.subr.mxu0 0.0
      %1387 = vmatpush1.msra.mxu0 0.0
      %1388 = vmatprep.subr.mxu0 0.0
      %1389 = vmatpush1.msra.mxu0 0.0
      %1390 = vmatprep.mubr.f32.mxu0 0.0
      %1391 = vmatmul.mubr.f32.gmra.mrb[0].mxu0 %v1317
      %v1392 = vpop.f32.mrb[0].mxu0
      %v1393 = vadd.f32 %v349, %v1392
      %v1394 = vpop.f32.mrb[0].mxu0
      %v1395 = vadd.f32 %v353, %v1394
      %1396 = vdwg.mxu0
      %v1397 = vadd.f32 %v1319, %v1393
      %v1398 = vxor.u32 %v1397, 2147483648
      %v1399 = vmul.f32 %v1398, 1.442695
      %v1400 = vpow.pop %v1399
      %v1401 = vadd.f32 %v1400, 1.0
      %v1402 = vrcp.pop %v1401
      %v1403 = vmul.f32 1.0, %v1402
      %v1404 = vadd.f32 %v1323, %v1393
      %v1405 = vxor.u32 %v1404, 2147483648
      %v1406 = vmul.f32 %v1405, 1.442695
      %v1407 = vpow.pop %v1406
      %v1408 = vadd.f32 %v1407, 1.0
      %v1409 = vrcp.pop %v1408
      %v1410 = vmul.f32 1.0, %v1409
      %v1411 = vadd.f32 %v1403, %v1410
      %v1412 = vmul.f32 %v1411, 0.5
      %v1413 = vadd.f32 %v1320, %v1395
      %v1414 = vxor.u32 %v1413, 2147483648
      %v1415 = vmul.f32 %v1414, 1.442695
      %v1416 = vpow.pop %v1415
      %v1417 = vadd.f32 %v1416, 1.0
      %v1418 = vrcp.pop %v1417
      %v1419 = vmul.f32 1.0, %v1418
      %v1420 = vadd.f32 %v1324, %v1395
      %v1421 = vxor.u32 %v1420, 2147483648
      %v1422 = vmul.f32 %v1421, 1.442695
      %v1423 = vpow.pop %v1422
      %v1424 = vadd.f32 %v1423, 1.0
      %v1425 = vrcp.pop %v1424
      %v1426 = vmul.f32 1.0, %v1425
      %v1427 = vadd.f32 %v1419, %v1426
      %v1428 = vmul.f32 %v1427, 0.5
      %v1429 = vmul.f32 %v1412, %v1317
      %1430 = vmatprep.subr.mxu0 0.0
      %1431 = vmatpush1.msra.mxu0 %v321
      %1432 = vmatprep.subr.mxu0 0.0
      %1433 = vmatpush1.msra.mxu0 %v322
      %1434 = vmatprep.subr.mxu0 0.0
      %1435 = vmatpush1.msra.mxu0 %v323
      %1436 = vmatprep.subr.mxu0 0.0
      %1437 = vmatpush1.msra.mxu0 %v324
      %1438 = vmatprep.subr.mxu0 0.0
      %1439 = vmatpush1.msra.mxu0 %v325
      %1440 = vmatprep.subr.mxu0 0.0
      %1441 = vmatpush1.msra.mxu0 %v326
      %1442 = vmatprep.subr.mxu0 0.0
      %1443 = vmatpush1.msra.mxu0 %v327
      %1444 = vmatprep.subr.mxu0 0.0
      %1445 = vmatpush1.msra.mxu0 %v328
      %1446 = vmatprep.subr.mxu0 0.0
      %1447 = vmatpush1.msra.mxu0 %v329
      %1448 = vmatprep.subr.mxu0 0.0
      %1449 = vmatpush1.msra.mxu0 %v330
      %1450 = vmatprep.subr.mxu0 0.0
      %1451 = vmatpush1.msra.mxu0 %v331
      %1452 = vmatprep.subr.mxu0 0.0
      %1453 = vmatpush1.msra.mxu0 %v332
      %1454 = vmatprep.subr.mxu0 0.0
      %1455 = vmatpush1.msra.mxu0 %v333
      %1456 = vmatprep.subr.mxu0 0.0
      %1457 = vmatpush1.msra.mxu0 %v334
      %1458 = vmatprep.subr.mxu0 0.0
      %1459 = vmatpush1.msra.mxu0 %v335
      %1460 = vmatprep.subr.mxu0 0.0
      %1461 = vmatpush1.msra.mxu0 %v336
      %1462 = vmatprep.subr.mxu0 0.0
      %1463 = vmatpush1.msra.mxu0 0.0
      %1464 = vmatprep.subr.mxu0 0.0
      %1465 = vmatpush1.msra.mxu0 0.0
      %1466 = vmatprep.subr.mxu0 0.0
      %1467 = vmatpush1.msra.mxu0 0.0
      %1468 = vmatprep.subr.mxu0 0.0
      %1469 = vmatpush1.msra.mxu0 0.0
      %1470 = vmatprep.subr.mxu0 0.0
      %1471 = vmatpush1.msra.mxu0 0.0
      %1472 = vmatprep.subr.mxu0 0.0
      %1473 = vmatpush1.msra.mxu0 0.0
      %1474 = vmatprep.subr.mxu0 0.0
      %1475 = vmatpush1.msra.mxu0 0.0
      %1476 = vmatprep.subr.mxu0 0.0
      %1477 = vmatpush1.msra.mxu0 0.0
      %1478 = vmatprep.subr.mxu0 0.0
      %1479 = vmatpush1.msra.mxu0 0.0
      %1480 = vmatprep.subr.mxu0 0.0
      %1481 = vmatpush1.msra.mxu0 0.0
      %1482 = vmatprep.subr.mxu0 0.0
      %1483 = vmatpush1.msra.mxu0 0.0
      %1484 = vmatprep.subr.mxu0 0.0
      %1485 = vmatpush1.msra.mxu0 0.0
      %1486 = vmatprep.subr.mxu0 0.0
      %1487 = vmatpush1.msra.mxu0 0.0
      %1488 = vmatprep.subr.mxu0 0.0
      %1489 = vmatpush1.msra.mxu0 0.0
      %1490 = vmatprep.subr.mxu0 0.0
      %1491 = vmatpush1.msra.mxu0 0.0
      %1492 = vmatprep.subr.mxu0 0.0
      %1493 = vmatpush1.msra.mxu0 0.0
      %1494 = vmatprep.mubr.f32.mxu0 0.0
      %1495 = vmatmul.mubr.f32.gmra.mrb[0].mxu0 %v1429
      %v1496 = vpop.f32.mrb[0].mxu0
      %v1497 = vadd.f32 %v464, %v1496
      %v1498 = vpop.f32.mrb[0].mxu0
      %1499 = vdwg.mxu0
      %v1500 = vadd.f32 %v1321, %v1325
      %v1501 = vadd.f32 %v1500, %v1497
      %v1502 = vtanh.pop %v1501
      %v1503 = vsub.f32 1.0, %v1428
      %v1504 = vmul.f32 %v1503, %v1502
      %v1505 = vmul.f32 %v1428, %v1317
      %v1506 = vadd.f32 %v1504, %v1505
      %1507 = vst [vmem:[#allocation2] sm:$0xff] %v1506
      %s1508 = scalar_lea.vmem %s281, 40
      %1509 = vst [vmem:[%s1508] sm:$0xff] %v1506
      %v1510 = vld [vmem:[#allocation2] sm:$0xff]
      %s1511 = scalar_lea.vmem %s268, 144
      %v1512 = vld [vmem:[%s1511] sm:$0xff]
      %v1513 = vld [vmem:[%s1511 + $0x8] sm:$0xff]
      %v1514 = vld [vmem:[%s1511 + $0x10] sm:$0xff]
      %s1515 = scalar_lea.vmem %s275, 144
      %v1516 = vld [vmem:[%s1515] sm:$0xff]
      %v1517 = vld [vmem:[%s1515 + $0x8] sm:$0xff]
      %v1518 = vld [vmem:[%s1515 + $0x10] sm:$0xff]
      %1519 = vmatprep.subr.mxu0 %v289
      %1520 = vmatpush1.msra.mxu0 %v288
      %1521 = vmatprep.subr.mxu0 %v291
      %1522 = vmatpush1.msra.mxu0 %v290
      %1523 = vmatprep.subr.mxu0 %v293
      %1524 = vmatpush1.msra.mxu0 %v292
      %1525 = vmatprep.subr.mxu0 %v295
      %1526 = vmatpush1.msra.mxu0 %v294
      %1527 = vmatprep.subr.mxu0 %v297
      %1528 = vmatpush1.msra.mxu0 %v296
      %1529 = vmatprep.subr.mxu0 %v299
      %1530 = vmatpush1.msra.mxu0 %v298
      %1531 = vmatprep.subr.mxu0 %v301
      %1532 = vmatpush1.msra.mxu0 %v300
      %1533 = vmatprep.subr.mxu0 %v303
      %1534 = vmatpush1.msra.mxu0 %v302
      %1535 = vmatprep.subr.mxu0 %v305
      %1536 = vmatpush1.msra.mxu0 %v304
      %1537 = vmatprep.subr.mxu0 %v307
      %1538 = vmatpush1.msra.mxu0 %v306
      %1539 = vmatprep.subr.mxu0 %v309
      %1540 = vmatpush1.msra.mxu0 %v308
      %1541 = vmatprep.subr.mxu0 %v311
      %1542 = vmatpush1.msra.mxu0 %v310
      %1543 = vmatprep.subr.mxu0 %v313
      %1544 = vmatpush1.msra.mxu0 %v312
      %1545 = vmatprep.subr.mxu0 %v315
      %1546 = vmatpush1.msra.mxu0 %v314
      %1547 = vmatprep.subr.mxu0 %v317
      %1548 = vmatpush1.msra.mxu0 %v316
      %1549 = vmatprep.subr.mxu0 %v319
      %1550 = vmatpush1.msra.mxu0 %v318
      %1551 = vmatprep.subr.mxu0 0.0
      %1552 = vmatpush1.msra.mxu0 0.0
      %1553 = vmatprep.subr.mxu0 0.0
      %1554 = vmatpush1.msra.mxu0 0.0
      %1555 = vmatprep.subr.mxu0 0.0
      %1556 = vmatpush1.msra.mxu0 0.0
      %1557 = vmatprep.subr.mxu0 0.0
      %1558 = vmatpush1.msra.mxu0 0.0
      %1559 = vmatprep.subr.mxu0 0.0
      %1560 = vmatpush1.msra.mxu0 0.0
      %1561 = vmatprep.subr.mxu0 0.0
      %1562 = vmatpush1.msra.mxu0 0.0
      %1563 = vmatprep.subr.mxu0 0.0
      %1564 = vmatpush1.msra.mxu0 0.0
      %1565 = vmatprep.subr.mxu0 0.0
      %1566 = vmatpush1.msra.mxu0 0.0
      %1567 = vmatprep.subr.mxu0 0.0
      %1568 = vmatpush1.msra.mxu0 0.0
      %1569 = vmatprep.subr.mxu0 0.0
      %1570 = vmatpush1.msra.mxu0 0.0
      %1571 = vmatprep.subr.mxu0 0.0
      %1572 = vmatpush1.msra.mxu0 0.0
      %1573 = vmatprep.subr.mxu0 0.0
      %1574 = vmatpush1.msra.mxu0 0.0
      %1575 = vmatprep.subr.mxu0 0.0
      %1576 = vmatpush1.msra.mxu0 0.0
      %1577 = vmatprep.subr.mxu0 0.0
      %1578 = vmatpush1.msra.mxu0 0.0
      %1579 = vmatprep.subr.mxu0 0.0
      %1580 = vmatpush1.msra.mxu0 0.0
      %1581 = vmatprep.subr.mxu0 0.0
      %1582 = vmatpush1.msra.mxu0 0.0
      %1583 = vmatprep.mubr.f32.mxu0 0.0
      %1584 = vmatmul.mubr.f32.gmra.mrb[0].mxu0 %v1510
      %v1585 = vpop.f32.mrb[0].mxu0
      %v1586 = vadd.f32 %v349, %v1585
      %v1587 = vpop.f32.mrb[0].mxu0
      %v1588 = vadd.f32 %v353, %v1587
      %1589 = vdwg.mxu0
      %v1590 = vadd.f32 %v1512, %v1586
      %v1591 = vxor.u32 %v1590, 2147483648
      %v1592 = vmul.f32 %v1591, 1.442695
      %v1593 = vpow.pop %v1592
      %v1594 = vadd.f32 %v1593, 1.0
      %v1595 = vrcp.pop %v1594
      %v1596 = vmul.f32 1.0, %v1595
      %v1597 = vadd.f32 %v1516, %v1586
      %v1598 = vxor.u32 %v1597, 2147483648
      %v1599 = vmul.f32 %v1598, 1.442695
      %v1600 = vpow.pop %v1599
      %v1601 = vadd.f32 %v1600, 1.0
      %v1602 = vrcp.pop %v1601
      %v1603 = vmul.f32 1.0, %v1602
      %v1604 = vadd.f32 %v1596, %v1603
      %v1605 = vmul.f32 %v1604, 0.5
      %v1606 = vadd.f32 %v1513, %v1588
      %v1607 = vxor.u32 %v1606, 2147483648
      %v1608 = vmul.f32 %v1607, 1.442695
      %v1609 = vpow.pop %v1608
      %v1610 = vadd.f32 %v1609, 1.0
      %v1611 = vrcp.pop %v1610
      %v1612 = vmul.f32 1.0, %v1611
      %v1613 = vadd.f32 %v1517, %v1588
      %v1614 = vxor.u32 %v1613, 2147483648
      %v1615 = vmul.f32 %v1614, 1.442695
      %v1616 = vpow.pop %v1615
      %v1617 = vadd.f32 %v1616, 1.0
      %v1618 = vrcp.pop %v1617
      %v1619 = vmul.f32 1.0, %v1618
      %v1620 = vadd.f32 %v1612, %v1619
      %v1621 = vmul.f32 %v1620, 0.5
      %v1622 = vmul.f32 %v1605, %v1510
      %1623 = vmatprep.subr.mxu0 0.0
      %1624 = vmatpush1.msra.mxu0 %v321
      %1625 = vmatprep.subr.mxu0 0.0
      %1626 = vmatpush1.msra.mxu0 %v322
      %1627 = vmatprep.subr.mxu0 0.0
      %1628 = vmatpush1.msra.mxu0 %v323
      %1629 = vmatprep.subr.mxu0 0.0
      %1630 = vmatpush1.msra.mxu0 %v324
      %1631 = vmatprep.subr.mxu0 0.0
      %1632 = vmatpush1.msra.mxu0 %v325
      %1633 = vmatprep.subr.mxu0 0.0
      %1634 = vmatpush1.msra.mxu0 %v326
      %1635 = vmatprep.subr.mxu0 0.0
      %1636 = vmatpush1.msra.mxu0 %v327
      %1637 = vmatprep.subr.mxu0 0.0
      %1638 = vmatpush1.msra.mxu0 %v328
      %1639 = vmatprep.subr.mxu0 0.0
      %1640 = vmatpush1.msra.mxu0 %v329
      %1641 = vmatprep.subr.mxu0 0.0
      %1642 = vmatpush1.msra.mxu0 %v330
      %1643 = vmatprep.subr.mxu0 0.0
      %1644 = vmatpush1.msra.mxu0 %v331
      %1645 = vmatprep.subr.mxu0 0.0
      %1646 = vmatpush1.msra.mxu0 %v332
      %1647 = vmatprep.subr.mxu0 0.0
      %1648 = vmatpush1.msra.mxu0 %v333
      %1649 = vmatprep.subr.mxu0 0.0
      %1650 = vmatpush1.msra.mxu0 %v334
      %1651 = vmatprep.subr.mxu0 0.0
      %1652 = vmatpush1.msra.mxu0 %v335
      %1653 = vmatprep.subr.mxu0 0.0
      %1654 = vmatpush1.msra.mxu0 %v336
      %1655 = vmatprep.subr.mxu0 0.0
      %1656 = vmatpush1.msra.mxu0 0.0
      %1657 = vmatprep.subr.mxu0 0.0
      %1658 = vmatpush1.msra.mxu0 0.0
      %1659 = vmatprep.subr.mxu0 0.0
      %1660 = vmatpush1.msra.mxu0 0.0
      %1661 = vmatprep.subr.mxu0 0.0
      %1662 = vmatpush1.msra.mxu0 0.0
      %1663 = vmatprep.subr.mxu0 0.0
      %1664 = vmatpush1.msra.mxu0 0.0
      %1665 = vmatprep.subr.mxu0 0.0
      %1666 = vmatpush1.msra.mxu0 0.0
      %1667 = vmatprep.subr.mxu0 0.0
      %1668 = vmatpush1.msra.mxu0 0.0
      %1669 = vmatprep.subr.mxu0 0.0
      %1670 = vmatpush1.msra.mxu0 0.0
      %1671 = vmatprep.subr.mxu0 0.0
      %1672 = vmatpush1.msra.mxu0 0.0
      %1673 = vmatprep.subr.mxu0 0.0
      %1674 = vmatpush1.msra.mxu0 0.0
      %1675 = vmatprep.subr.mxu0 0.0
      %1676 = vmatpush1.msra.mxu0 0.0
      %1677 = vmatprep.subr.mxu0 0.0
      %1678 = vmatpush1.msra.mxu0 0.0
      %1679 = vmatprep.subr.mxu0 0.0
      %1680 = vmatpush1.msra.mxu0 0.0
      %1681 = vmatprep.subr.mxu0 0.0
      %1682 = vmatpush1.msra.mxu0 0.0
      %1683 = vmatprep.subr.mxu0 0.0
      %1684 = vmatpush1.msra.mxu0 0.0
      %1685 = vmatprep.subr.mxu0 0.0
      %1686 = vmatpush1.msra.mxu0 0.0
      %1687 = vmatprep.mubr.f32.mxu0 0.0
      %1688 = vmatmul.mubr.f32.gmra.mrb[0].mxu0 %v1622
      %v1689 = vpop.f32.mrb[0].mxu0
      %v1690 = vadd.f32 %v464, %v1689
      %v1691 = vpop.f32.mrb[0].mxu0
      %1692 = vdwg.mxu0
      %v1693 = vadd.f32 %v1514, %v1518
      %v1694 = vadd.f32 %v1693, %v1690
      %v1695 = vtanh.pop %v1694
      %v1696 = vsub.f32 1.0, %v1621
      %v1697 = vmul.f32 %v1696, %v1695
      %v1698 = vmul.f32 %v1621, %v1510
      %v1699 = vadd.f32 %v1697, %v1698
      %1700 = vst [vmem:[#allocation2] sm:$0xff] %v1699
      %s1701 = scalar_lea.vmem %s281, 48
      %1702 = vst [vmem:[%s1701] sm:$0xff] %v1699
      %v1703 = vld [vmem:[#allocation2] sm:$0xff]
      %s1704 = scalar_lea.vmem %s268, 168
      %v1705 = vld [vmem:[%s1704] sm:$0xff]
      %v1706 = vld [vmem:[%s1704 + $0x8] sm:$0xff]
      %v1707 = vld [vmem:[%s1704 + $0x10] sm:$0xff]
      %s1708 = scalar_lea.vmem %s275, 168
      %v1709 = vld [vmem:[%s1708] sm:$0xff]
      %v1710 = vld [vmem:[%s1708 + $0x8] sm:$0xff]
      %v1711 = vld [vmem:[%s1708 + $0x10] sm:$0xff]
      %1712 = vmatprep.subr.mxu0 %v289
      %1713 = vmatpush1.msra.mxu0 %v288
      %1714 = vmatprep.subr.mxu0 %v291
      %1715 = vmatpush1.msra.mxu0 %v290
      %1716 = vmatprep.subr.mxu0 %v293
      %1717 = vmatpush1.msra.mxu0 %v292
      %1718 = vmatprep.subr.mxu0 %v295
      %1719 = vmatpush1.msra.mxu0 %v294
      %1720 = vmatprep.subr.mxu0 %v297
      %1721 = vmatpush1.msra.mxu0 %v296
      %1722 = vmatprep.subr.mxu0 %v299
      %1723 = vmatpush1.msra.mxu0 %v298
      %1724 = vmatprep.subr.mxu0 %v301
      %1725 = vmatpush1.msra.mxu0 %v300
      %1726 = vmatprep.subr.mxu0 %v303
      %1727 = vmatpush1.msra.mxu0 %v302
      %1728 = vmatprep.subr.mxu0 %v305
      %1729 = vmatpush1.msra.mxu0 %v304
      %1730 = vmatprep.subr.mxu0 %v307
      %1731 = vmatpush1.msra.mxu0 %v306
      %1732 = vmatprep.subr.mxu0 %v309
      %1733 = vmatpush1.msra.mxu0 %v308
      %1734 = vmatprep.subr.mxu0 %v311
      %1735 = vmatpush1.msra.mxu0 %v310
      %1736 = vmatprep.subr.mxu0 %v313
      %1737 = vmatpush1.msra.mxu0 %v312
      %1738 = vmatprep.subr.mxu0 %v315
      %1739 = vmatpush1.msra.mxu0 %v314
      %1740 = vmatprep.subr.mxu0 %v317
      %1741 = vmatpush1.msra.mxu0 %v316
      %1742 = vmatprep.subr.mxu0 %v319
      %1743 = vmatpush1.msra.mxu0 %v318
      %1744 = vmatprep.subr.mxu0 0.0
      %1745 = vmatpush1.msra.mxu0 0.0
      %1746 = vmatprep.subr.mxu0 0.0
      %1747 = vmatpush1.msra.mxu0 0.0
      %1748 = vmatprep.subr.mxu0 0.0
      %1749 = vmatpush1.msra.mxu0 0.0
      %1750 = vmatprep.subr.mxu0 0.0
      %1751 = vmatpush1.msra.mxu0 0.0
      %1752 = vmatprep.subr.mxu0 0.0
      %1753 = vmatpush1.msra.mxu0 0.0
      %1754 = vmatprep.subr.mxu0 0.0
      %1755 = vmatpush1.msra.mxu0 0.0
      %1756 = vmatprep.subr.mxu0 0.0
      %1757 = vmatpush1.msra.mxu0 0.0
      %1758 = vmatprep.subr.mxu0 0.0
      %1759 = vmatpush1.msra.mxu0 0.0
      %1760 = vmatprep.subr.mxu0 0.0
      %1761 = vmatpush1.msra.mxu0 0.0
      %1762 = vmatprep.subr.mxu0 0.0
      %1763 = vmatpush1.msra.mxu0 0.0
      %1764 = vmatprep.subr.mxu0 0.0
      %1765 = vmatpush1.msra.mxu0 0.0
      %1766 = vmatprep.subr.mxu0 0.0
      %1767 = vmatpush1.msra.mxu0 0.0
      %1768 = vmatprep.subr.mxu0 0.0
      %1769 = vmatpush1.msra.mxu0 0.0
      %1770 = vmatprep.subr.mxu0 0.0
      %1771 = vmatpush1.msra.mxu0 0.0
      %1772 = vmatprep.subr.mxu0 0.0
      %1773 = vmatpush1.msra.mxu0 0.0
      %1774 = vmatprep.subr.mxu0 0.0
      %1775 = vmatpush1.msra.mxu0 0.0
      %1776 = vmatprep.mubr.f32.mxu0 0.0
      %1777 = vmatmul.mubr.f32.gmra.mrb[0].mxu0 %v1703
      %v1778 = vpop.f32.mrb[0].mxu0
      %v1779 = vadd.f32 %v349, %v1778
      %v1780 = vpop.f32.mrb[0].mxu0
      %v1781 = vadd.f32 %v353, %v1780
      %1782 = vdwg.mxu0
      %v1783 = vadd.f32 %v1705, %v1779
      %v1784 = vxor.u32 %v1783, 2147483648
      %v1785 = vmul.f32 %v1784, 1.442695
      %v1786 = vpow.pop %v1785
      %v1787 = vadd.f32 %v1786, 1.0
      %v1788 = vrcp.pop %v1787
      %v1789 = vmul.f32 1.0, %v1788
      %v1790 = vadd.f32 %v1709, %v1779
      %v1791 = vxor.u32 %v1790, 2147483648
      %v1792 = vmul.f32 %v1791, 1.442695
      %v1793 = vpow.pop %v1792
      %v1794 = vadd.f32 %v1793, 1.0
      %v1795 = vrcp.pop %v1794
      %v1796 = vmul.f32 1.0, %v1795
      %v1797 = vadd.f32 %v1789, %v1796
      %v1798 = vmul.f32 %v1797, 0.5
      %v1799 = vadd.f32 %v1706, %v1781
      %v1800 = vxor.u32 %v1799, 2147483648
      %v1801 = vmul.f32 %v1800, 1.442695
      %v1802 = vpow.pop %v1801
      %v1803 = vadd.f32 %v1802, 1.0
      %v1804 = vrcp.pop %v1803
      %v1805 = vmul.f32 1.0, %v1804
      %v1806 = vadd.f32 %v1710, %v1781
      %v1807 = vxor.u32 %v1806, 2147483648
      %v1808 = vmul.f32 %v1807, 1.442695
      %v1809 = vpow.pop %v1808
      %v1810 = vadd.f32 %v1809, 1.0
      %v1811 = vrcp.pop %v1810
      %v1812 = vmul.f32 1.0, %v1811
      %v1813 = vadd.f32 %v1805, %v1812
      %v1814 = vmul.f32 %v1813, 0.5
      %v1815 = vmul.f32 %v1798, %v1703
      %1816 = vmatprep.subr.mxu0 0.0
      %1817 = vmatpush1.msra.mxu0 %v321
      %1818 = vmatprep.subr.mxu0 0.0
      %1819 = vmatpush1.msra.mxu0 %v322
      %1820 = vmatprep.subr.mxu0 0.0
      %1821 = vmatpush1.msra.mxu0 %v323
      %1822 = vmatprep.subr.mxu0 0.0
      %1823 = vmatpush1.msra.mxu0 %v324
      %1824 = vmatprep.subr.mxu0 0.0
      %1825 = vmatpush1.msra.mxu0 %v325
      %1826 = vmatprep.subr.mxu0 0.0
      %1827 = vmatpush1.msra.mxu0 %v326
      %1828 = vmatprep.subr.mxu0 0.0
      %1829 = vmatpush1.msra.mxu0 %v327
      %1830 = vmatprep.subr.mxu0 0.0
      %1831 = vmatpush1.msra.mxu0 %v328
      %1832 = vmatprep.subr.mxu0 0.0
      %1833 = vmatpush1.msra.mxu0 %v329
      %1834 = vmatprep.subr.mxu0 0.0
      %1835 = vmatpush1.msra.mxu0 %v330
      %1836 = vmatprep.subr.mxu0 0.0
      %1837 = vmatpush1.msra.mxu0 %v331
      %1838 = vmatprep.subr.mxu0 0.0
      %1839 = vmatpush1.msra.mxu0 %v332
      %1840 = vmatprep.subr.mxu0 0.0
      %1841 = vmatpush1.msra.mxu0 %v333
      %1842 = vmatprep.subr.mxu0 0.0
      %1843 = vmatpush1.msra.mxu0 %v334
      %1844 = vmatprep.subr.mxu0 0.0
      %1845 = vmatpush1.msra.mxu0 %v335
      %1846 = vmatprep.subr.mxu0 0.0
      %1847 = vmatpush1.msra.mxu0 %v336
      %1848 = vmatprep.subr.mxu0 0.0
      %1849 = vmatpush1.msra.mxu0 0.0
      %1850 = vmatprep.subr.mxu0 0.0
      %1851 = vmatpush1.msra.mxu0 0.0
      %1852 = vmatprep.subr.mxu0 0.0
      %1853 = vmatpush1.msra.mxu0 0.0
      %1854 = vmatprep.subr.mxu0 0.0
      %1855 = vmatpush1.msra.mxu0 0.0
      %1856 = vmatprep.subr.mxu0 0.0
      %1857 = vmatpush1.msra.mxu0 0.0
      %1858 = vmatprep.subr.mxu0 0.0
      %1859 = vmatpush1.msra.mxu0 0.0
      %1860 = vmatprep.subr.mxu0 0.0
      %1861 = vmatpush1.msra.mxu0 0.0
      %1862 = vmatprep.subr.mxu0 0.0
      %1863 = vmatpush1.msra.mxu0 0.0
      %1864 = vmatprep.subr.mxu0 0.0
      %1865 = vmatpush1.msra.mxu0 0.0
      %1866 = vmatprep.subr.mxu0 0.0
      %1867 = vmatpush1.msra.mxu0 0.0
      %1868 = vmatprep.subr.mxu0 0.0
      %1869 = vmatpush1.msra.mxu0 0.0
      %1870 = vmatprep.subr.mxu0 0.0
      %1871 = vmatpush1.msra.mxu0 0.0
      %1872 = vmatprep.subr.mxu0 0.0
      %1873 = vmatpush1.msra.mxu0 0.0
      %1874 = vmatprep.subr.mxu0 0.0
      %1875 = vmatpush1.msra.mxu0 0.0
      %1876 = vmatprep.subr.mxu0 0.0
      %1877 = vmatpush1.msra.mxu0 0.0
      %1878 = vmatprep.subr.mxu0 0.0
      %1879 = vmatpush1.msra.mxu0 0.0
      %1880 = vmatprep.mubr.f32.mxu0 0.0
      %1881 = vmatmul.mubr.f32.gmra.mrb[0].mxu0 %v1815
      %v1882 = vpop.f32.mrb[0].mxu0
      %v1883 = vadd.f32 %v464, %v1882
      %v1884 = vpop.f32.mrb[0].mxu0
      %1885 = vdwg.mxu0
      %v1886 = vadd.f32 %v1707, %v1711
      %v1887 = vadd.f32 %v1886, %v1883
      %v1888 = vtanh.pop %v1887
      %v1889 = vsub.f32 1.0, %v1814
      %v1890 = vmul.f32 %v1889, %v1888
      %v1891 = vmul.f32 %v1814, %v1703
      %v1892 = vadd.f32 %v1890, %v1891
      %1893 = vst [vmem:[#allocation2] sm:$0xff] %v1892
      %s1894 = scalar_lea.vmem %s281, 56
      %1895 = vst [vmem:[%s1894] sm:$0xff] %v1892
      %s1896 = smul.u32 8, %s17
      %p1897 = scmp.lt.s32.totalorder %s1896, 15
      %s1898 = scalar_select %p1897, %s1896, 15
      %s1899 = smul.addr %s1898, 8
      %s1900 = scalar_lea.vmem %s6, %s1899
      // Predicated region
      $region49: #{dual_input_gru.1} parent=43 // pred_check
        %p1901 = pneg %p171
      $region50: #{dual_input_gru.1} parent=43 // pred_check_branch
        %1903 = sbr.rel (%p1901) target = $region52
      $region51: #{dual_input_gru.1} parent=43 // pred_region
        %s1904 = smul.u32 8, %s17
      $region52: #{dual_input_gru.1} parent=43 // pred_fallthru
        _
    $region44: #{dual_input_gru.1} parent=5 // pred_fallthru
      _
    %p1905 = scmp.le.s32.totalorder 2, %s12
    // Predicated region
    $region53: #{dual_input_gru.1} parent=5 // pred_check
      %p1906 = pneg %p1905
    $region54: #{dual_input_gru.1} parent=5 // pred_check_branch
      %1908 = sbr.rel (%p1906) target = $region56
    $region55: #{dual_input_gru.1} parent=5 // pred_region
      %s1909 = ssub.s32 %s12, 2
      // Predicated region
      $region57: #{dual_input_gru.1} parent=55 // pred_check
        %p1910 = pneg %p177
      $region58: #{dual_input_gru.1} parent=55 // pred_check_branch
        %1912 = sbr.rel (%p1910) target = $region60
      $region59: #{dual_input_gru.1} parent=55 // pred_region
        %s1913 = smul.u32 8, %s18
        %p1914 = scmp.lt.s32.totalorder %s1913, 15
        %s1915 = scalar_select %p1914, %s1913, 15
        %s1916 = smul.addr %s1915, 8
        %s1917 = scalar_lea.vmem %s6, %s1916
      $region60: #{dual_input_gru.1} parent=55 // pred_fallthru
        _
    $region56: #{dual_input_gru.1} parent=5 // pred_fallthru
      _
  $region6: #{dual_input_gru.1} parent=0 // loop_footer
    %s16 = sadd.s32 1, %s12
  $region7: #{dual_input_gru.1} parent=0 // loop_footer_branch
    %11 = sbr.rel target = $region3
  $region8: #{dual_input_gru.1} parent=0 // loop_exit
    _

</llo_original>
